<compile_context>
chip_gen: v7x
topology: tpu7x:2x2x1
jax: 0.10.0
libtpu: 0.0.40
codegen_flags: <defaults>
</compile_context>

<pallas_src>
import functools

import jax
import jax.numpy as jnp
from jax import lax
from jax.experimental import pallas as pl
from jax.experimental.pallas import tpu as pltpu


# ------------------------------------------------------------------- kernel
def _make_fused_kernel(bn, cin, h, w, k):
    ho1, wo1 = h - k + 1, w - k + 1        # conv1 output spatial dims
    ho2, wo2 = ho1 - k + 1, wo1 - k + 1    # conv2_* output spatial dims

    # Offsets into the packed parameter slab (SMEM, flat f32).
    W1 = 0
    B1 = W1 + cin * k * k
    W21 = B1 + 1
    B21 = W21 + k * k
    W22 = B21 + 1
    B22 = W22 + k * k

    def kernel(p_ref, x_ref, xa_ref, xbc_ref):
        # p_ref  : (P,) f32 SMEM   -- packed [w1 | b1 | w21 | b21 | w22 | b22]
        # x_ref  : (bn, cin, h, w) f32 VMEM
        # xa_ref : (bn, 1, ho1, wo1) f32 VMEM (also reused as conv2 input)
        # xbc_ref: (bn, 2, ho2, wo2) f32 VMEM (channel 0 = xb, channel 1 = xc)

        # ---------------- conv1 (cin -> 1, valid 3x3) ----------------
        # k independent partial accumulators (one per kernel row) -> the VALU
        # dependency chain is ~cin*k instead of cin*k*k.
        # NOTE: cin is tiny here so a static Python unroll is fine; for large
        # cin switch this to lax.fori_loop(..., unroll=small) to bound vreg
        # live ranges.
        parts = []
        for r in range(k):
            acc = None
            for ci in range(cin):
                for c in range(k):
                    wv = p_ref[W1 + (ci * k + r) * k + c]
                    # Shifted tap read straight from VMEM at offset (r, c):
                    # the window shift is handled on the load/relayout path
                    # instead of VALU mask+select chains on a sliced value.
                    tap = x_ref[:, ci, r:r + ho1, c:c + wo1]
                    term = wv * tap
                    acc = term if acc is None else acc + term
            parts.append(acc)
        xa = parts[0]
        for r in range(1, k):
            xa = xa + parts[r]
        xa = xa + p_ref[B1]
        xa_ref[:, 0, :, :] = xa

        # ------------- conv2_1 / conv2_2 (1 -> 1, valid 3x3) -------------
        # Taps are read back from the just-written xa_ref (VMEM) once per
        # (r, c) and shared between the two output convolutions.
        pb, pc = [], []
        for r in range(k):
            accb = None
            accc = None
            for c in range(k):
                tap = xa_ref[:, 0, r:r + ho2, c:c + wo2]
                tb = p_ref[W21 + r * k + c] * tap
                tc = p_ref[W22 + r * k + c] * tap
                accb = tb if accb is None else accb + tb
                accc = tc if accc is None else accc + tc
            pb.append(accb)
            pc.append(accc)
        xb = pb[0]
        xc = pc[0]
        for r in range(1, k):
            xb = xb + pb[r]
            xc = xc + pc[r]
        xbc_ref[:, 0, :, :] = xb + p_ref[B21]
        xbc_ref[:, 1, :, :] = xc + p_ref[B22]

    return kernel


# ------------------------------------------------------------------ wrapper
def pack_params(params):
    """Flatten all conv weights/biases into one f32 slab (done once at init)."""
    (w1, b1), (w21, b21), (w22, b22) = params
    return jnp.concatenate([
        w1.reshape(-1), b1.reshape(-1),
        w21.reshape(-1), b21.reshape(-1),
        w22.reshape(-1), b22.reshape(-1),
    ]).astype(jnp.float32)


def _pallas_forward(x, packed, *, cin, k):
    n, cin_x, h, w = x.shape
    assert cin_x == cin, (cin_x, cin)
    ho1, wo1 = h - k + 1, w - k + 1
    ho2, wo2 = ho1 - k + 1, wo1 - k + 1

    # Whole batch in one block while tiny; tile the batch (grid axis marked
    # "parallel" -> shards across v7x's 2 TensorCores) once it grows.
    bn = n if n <= 8 else 8
    grid = (pl.cdiv(n, bn),)

    kernel = _make_fused_kernel(bn, cin, h, w, k)

    xa, xbc = pl.pallas_call(
        kernel,
        grid=grid,
        out_shape=(
            jax.ShapeDtypeStruct((n, 1, ho1, wo1), jnp.float32),
            jax.ShapeDtypeStruct((n, 2, ho2, wo2), jnp.float32),
        ),
        in_specs=[
            pl.BlockSpec(memory_space=pltpu.MemorySpace.SMEM),       # packed params
            pl.BlockSpec((bn, cin, h, w), lambda b: (b, 0, 0, 0)),   # x
        ],
        out_specs=(
            pl.BlockSpec((bn, 1, ho1, wo1), lambda b: (b, 0, 0, 0)),
            pl.BlockSpec((bn, 2, ho2, wo2), lambda b: (b, 0, 0, 0)),
        ),
        compiler_params=pltpu.CompilerParams(
            dimension_semantics=("parallel",)),
    )(packed, x.astype(jnp.float32))

    # Container outputs (dict / tuple) are plain Python structure in the wrapper.
    xb = xbc[:, 0:1]
    xc = xbc[:, 1:2]
    return {"xa": xa, "xb_and_xc": (xb, xc)}


def make_containers_outputs_forward(params):
    """Pre-pack params once and return a jitted forward(x) (hot path has no
    per-call weight casts/reshapes)."""
    (w1, _), _, _ = params            # w1: (1, cin, k, k) OIHW
    cin, k = int(w1.shape[1]), int(w1.shape[-1])
    packed = pack_params(params)
    fwd = jax.jit(functools.partial(_pallas_forward, cin=cin, k=k))
    return lambda x: fwd(x, packed)


# --------------------------------------------------------------- reference
def _ref_forward(x, params):
    (w1, b1), (w21, b21), (w22, b22) = params

    def conv(inp, wgt, bias):
        y = lax.conv_general_dilated(
            inp, wgt, window_strides=(1, 1), padding="VALID",
            dimension_numbers=("NCHW", "OIHW", "NCHW"))
        return y + bias[None, :, None, None]

    xa = conv(x, w1, b1)
    return {"xa": xa, "xb_and_xc": (conv(xa, w21, b21), conv(xa, w22, b22))}


if __name__ == "__main__":
    key = jax.random.PRNGKey(0)
    kx, k1, k2, k3, k4, k5, k6 = jax.random.split(key, 7)

    n, cin, h, w, k = 2, 4, 16, 16, 3
    x = jax.random.normal(kx, (n, cin, h, w), dtype=jnp.float32)

    w1 = 0.2 * jax.random.normal(k1, (1, cin, k, k), dtype=jnp.float32)
    b1 = jax.random.normal(k2, (1,), dtype=jnp.float32)
    w21 = 0.2 * jax.random.normal(k3, (1, 1, k, k), dtype=jnp.float32)
    b21 = jax.random.normal(k4, (1,), dtype=jnp.float32)
    w22 = 0.2 * jax.random.normal(k5, (1, 1, k, k), dtype=jnp.float32)
    b22 = jax.random.normal(k6, (1,), dtype=jnp.float32)
    params = ((w1, b1), (w21, b21), (w22, b22))

    forward = make_containers_outputs_forward(params)
    out = jax.block_until_ready(forward(x))

    ref = _ref_forward(x, params)
    assert out["xa"].shape == (n, 1, h - 2, w - 2), out["xa"].shape
    assert out["xb_and_xc"][0].shape == (n, 1, h - 4, w - 4)
    assert out["xb_and_xc"][1].shape == (n, 1, h - 4, w - 4)
    assert jnp.allclose(out["xa"], ref["xa"], rtol=1e-5, atol=1e-4)
    assert jnp.allclose(out["xb_and_xc"][0], ref["xb_and_xc"][0], rtol=1e-5, atol=1e-4)
    assert jnp.allclose(out["xb_and_xc"][1], ref["xb_and_xc"][1], rtol=1e-5, atol=1e-4)

    print("KERNEL_OK")
</pallas_src>

<mosaic_0001>
module attributes {stable_mosaic.version = 11 : i64} {
  func.func @kernel(%arg0: i32, %arg1: memref<57xf32, #tpu.memory_space<smem>>, %arg2: memref<2x4x16x16xf32, #tpu.memory_space<vmem>>, %arg3: memref<2x1x14x14xf32, #tpu.memory_space<vmem>>, %arg4: memref<2x2x12x12xf32, #tpu.memory_space<vmem>>) attributes {dimension_semantics = [#tpu.dimension_semantics<parallel>], iteration_bounds = array<i64: 1>, scalar_prefetch = 0 : i64, scratch_operands = 0 : i64, tpu.core_type = #tpu.core_type<tc>, window_params = [{transform_indices = @transform_0, window_bounds = array<i64: 57>}, {transform_indices = @transform_1, window_bounds = array<i64: 2, 4, 16, 16>}, {transform_indices = @transform_2, window_bounds = array<i64: 2, 1, 14, 14>}, {transform_indices = @transform_3, window_bounds = array<i64: 2, 2, 12, 12>}]} {
    %c0 = arith.constant 0 : index
    %0 = memref.load %arg1[%c0] : memref<57xf32, #tpu.memory_space<smem>>
    %c0_0 = arith.constant 0 : index
    %c0_1 = arith.constant 0 : index
    %c0_2 = arith.constant 0 : index
    %c0_3 = arith.constant 0 : index
    %1 = vector.load %arg2[%c0_0, %c0_1, %c0_2, %c0_3] : memref<2x4x16x16xf32, #tpu.memory_space<vmem>>, vector<2x1x14x14xf32>
    %2 = vector.shape_cast %1 : vector<2x1x14x14xf32> to vector<2x14x14xf32>
    %3 = vector.broadcast %0 : f32 to vector<2x14x14xf32>
    %4 = arith.mulf %3, %2 : vector<2x14x14xf32>
    %c1 = arith.constant 1 : index
    %5 = memref.load %arg1[%c1] : memref<57xf32, #tpu.memory_space<smem>>
    %c0_4 = arith.constant 0 : index
    %c0_5 = arith.constant 0 : index
    %c0_6 = arith.constant 0 : index
    %c1_7 = arith.constant 1 : index
    %6 = vector.load %arg2[%c0_4, %c0_5, %c0_6, %c1_7] : memref<2x4x16x16xf32, #tpu.memory_space<vmem>>, vector<2x1x14x14xf32>
    %7 = vector.shape_cast %6 : vector<2x1x14x14xf32> to vector<2x14x14xf32>
    %8 = vector.broadcast %5 : f32 to vector<2x14x14xf32>
    %9 = arith.mulf %8, %7 : vector<2x14x14xf32>
    %10 = arith.addf %4, %9 : vector<2x14x14xf32>
    %c2 = arith.constant 2 : index
    %11 = memref.load %arg1[%c2] : memref<57xf32, #tpu.memory_space<smem>>
    %c0_8 = arith.constant 0 : index
    %c0_9 = arith.constant 0 : index
    %c0_10 = arith.constant 0 : index
    %c2_11 = arith.constant 2 : index
    %12 = vector.load %arg2[%c0_8, %c0_9, %c0_10, %c2_11] : memref<2x4x16x16xf32, #tpu.memory_space<vmem>>, vector<2x1x14x14xf32>
    %13 = vector.shape_cast %12 : vector<2x1x14x14xf32> to vector<2x14x14xf32>
    %14 = vector.broadcast %11 : f32 to vector<2x14x14xf32>
    %15 = arith.mulf %14, %13 : vector<2x14x14xf32>
    %16 = arith.addf %10, %15 : vector<2x14x14xf32>
    %c9 = arith.constant 9 : index
    %17 = memref.load %arg1[%c9] : memref<57xf32, #tpu.memory_space<smem>>
    %c0_12 = arith.constant 0 : index
    %c1_13 = arith.constant 1 : index
    %c0_14 = arith.constant 0 : index
    %c0_15 = arith.constant 0 : index
    %18 = vector.load %arg2[%c0_12, %c1_13, %c0_14, %c0_15] : memref<2x4x16x16xf32, #tpu.memory_space<vmem>>, vector<2x1x14x14xf32>
    %19 = vector.shape_cast %18 : vector<2x1x14x14xf32> to vector<2x14x14xf32>
    %20 = vector.broadcast %17 : f32 to vector<2x14x14xf32>
    %21 = arith.mulf %20, %19 : vector<2x14x14xf32>
    %22 = arith.addf %16, %21 : vector<2x14x14xf32>
    %c10 = arith.constant 10 : index
    %23 = memref.load %arg1[%c10] : memref<57xf32, #tpu.memory_space<smem>>
    %c0_16 = arith.constant 0 : index
    %c1_17 = arith.constant 1 : index
    %c0_18 = arith.constant 0 : index
    %c1_19 = arith.constant 1 : index
    %24 = vector.load %arg2[%c0_16, %c1_17, %c0_18, %c1_19] : memref<2x4x16x16xf32, #tpu.memory_space<vmem>>, vector<2x1x14x14xf32>
    %25 = vector.shape_cast %24 : vector<2x1x14x14xf32> to vector<2x14x14xf32>
    %26 = vector.broadcast %23 : f32 to vector<2x14x14xf32>
    %27 = arith.mulf %26, %25 : vector<2x14x14xf32>
    %28 = arith.addf %22, %27 : vector<2x14x14xf32>
    %c11 = arith.constant 11 : index
    %29 = memref.load %arg1[%c11] : memref<57xf32, #tpu.memory_space<smem>>
    %c0_20 = arith.constant 0 : index
    %c1_21 = arith.constant 1 : index
    %c0_22 = arith.constant 0 : index
    %c2_23 = arith.constant 2 : index
    %30 = vector.load %arg2[%c0_20, %c1_21, %c0_22, %c2_23] : memref<2x4x16x16xf32, #tpu.memory_space<vmem>>, vector<2x1x14x14xf32>
    %31 = vector.shape_cast %30 : vector<2x1x14x14xf32> to vector<2x14x14xf32>
    %32 = vector.broadcast %29 : f32 to vector<2x14x14xf32>
    %33 = arith.mulf %32, %31 : vector<2x14x14xf32>
    %34 = arith.addf %28, %33 : vector<2x14x14xf32>
    %c18 = arith.constant 18 : index
    %35 = memref.load %arg1[%c18] : memref<57xf32, #tpu.memory_space<smem>>
    %c0_24 = arith.constant 0 : index
    %c2_25 = arith.constant 2 : index
    %c0_26 = arith.constant 0 : index
    %c0_27 = arith.constant 0 : index
    %36 = vector.load %arg2[%c0_24, %c2_25, %c0_26, %c0_27] : memref<2x4x16x16xf32, #tpu.memory_space<vmem>>, vector<2x1x14x14xf32>
    %37 = vector.shape_cast %36 : vector<2x1x14x14xf32> to vector<2x14x14xf32>
    %38 = vector.broadcast %35 : f32 to vector<2x14x14xf32>
    %39 = arith.mulf %38, %37 : vector<2x14x14xf32>
    %40 = arith.addf %34, %39 : vector<2x14x14xf32>
    %c19 = arith.constant 19 : index
    %41 = memref.load %arg1[%c19] : memref<57xf32, #tpu.memory_space<smem>>
    %c0_28 = arith.constant 0 : index
    %c2_29 = arith.constant 2 : index
    %c0_30 = arith.constant 0 : index
    %c1_31 = arith.constant 1 : index
    %42 = vector.load %arg2[%c0_28, %c2_29, %c0_30, %c1_31] : memref<2x4x16x16xf32, #tpu.memory_space<vmem>>, vector<2x1x14x14xf32>
    %43 = vector.shape_cast %42 : vector<2x1x14x14xf32> to vector<2x14x14xf32>
    %44 = vector.broadcast %41 : f32 to vector<2x14x14xf32>
    %45 = arith.mulf %44, %43 : vector<2x14x14xf32>
    %46 = arith.addf %40, %45 : vector<2x14x14xf32>
    %c20 = arith.constant 20 : index
    %47 = memref.load %arg1[%c20] : memref<57xf32, #tpu.memory_space<smem>>
    %c0_32 = arith.constant 0 : index
    %c2_33 = arith.constant 2 : index
    %c0_34 = arith.constant 0 : index
    %c2_35 = arith.constant 2 : index
    %48 = vector.load %arg2[%c0_32, %c2_33, %c0_34, %c2_35] : memref<2x4x16x16xf32, #tpu.memory_space<vmem>>, vector<2x1x14x14xf32>
    %49 = vector.shape_cast %48 : vector<2x1x14x14xf32> to vector<2x14x14xf32>
    %50 = vector.broadcast %47 : f32 to vector<2x14x14xf32>
    %51 = arith.mulf %50, %49 : vector<2x14x14xf32>
    %52 = arith.addf %46, %51 : vector<2x14x14xf32>
    %c27 = arith.constant 27 : index
    %53 = memref.load %arg1[%c27] : memref<57xf32, #tpu.memory_space<smem>>
    %c0_36 = arith.constant 0 : index
    %c3 = arith.constant 3 : index
    %c0_37 = arith.constant 0 : index
    %c0_38 = arith.constant 0 : index
    %54 = vector.load %arg2[%c0_36, %c3, %c0_37, %c0_38] : memref<2x4x16x16xf32, #tpu.memory_space<vmem>>, vector<2x1x14x14xf32>
    %55 = vector.shape_cast %54 : vector<2x1x14x14xf32> to vector<2x14x14xf32>
    %56 = vector.broadcast %53 : f32 to vector<2x14x14xf32>
    %57 = arith.mulf %56, %55 : vector<2x14x14xf32>
    %58 = arith.addf %52, %57 : vector<2x14x14xf32>
    %c28 = arith.constant 28 : index
    %59 = memref.load %arg1[%c28] : memref<57xf32, #tpu.memory_space<smem>>
    %c0_39 = arith.constant 0 : index
    %c3_40 = arith.constant 3 : index
    %c0_41 = arith.constant 0 : index
    %c1_42 = arith.constant 1 : index
    %60 = vector.load %arg2[%c0_39, %c3_40, %c0_41, %c1_42] : memref<2x4x16x16xf32, #tpu.memory_space<vmem>>, vector<2x1x14x14xf32>
    %61 = vector.shape_cast %60 : vector<2x1x14x14xf32> to vector<2x14x14xf32>
    %62 = vector.broadcast %59 : f32 to vector<2x14x14xf32>
    %63 = arith.mulf %62, %61 : vector<2x14x14xf32>
    %64 = arith.addf %58, %63 : vector<2x14x14xf32>
    %c29 = arith.constant 29 : index
    %65 = memref.load %arg1[%c29] : memref<57xf32, #tpu.memory_space<smem>>
    %c0_43 = arith.constant 0 : index
    %c3_44 = arith.constant 3 : index
    %c0_45 = arith.constant 0 : index
    %c2_46 = arith.constant 2 : index
    %66 = vector.load %arg2[%c0_43, %c3_44, %c0_45, %c2_46] : memref<2x4x16x16xf32, #tpu.memory_space<vmem>>, vector<2x1x14x14xf32>
    %67 = vector.shape_cast %66 : vector<2x1x14x14xf32> to vector<2x14x14xf32>
    %68 = vector.broadcast %65 : f32 to vector<2x14x14xf32>
    %69 = arith.mulf %68, %67 : vector<2x14x14xf32>
    %70 = arith.addf %64, %69 : vector<2x14x14xf32>
    %c3_47 = arith.constant 3 : index
    %71 = memref.load %arg1[%c3_47] : memref<57xf32, #tpu.memory_space<smem>>
    %c0_48 = arith.constant 0 : index
    %c0_49 = arith.constant 0 : index
    %c1_50 = arith.constant 1 : index
    %c0_51 = arith.constant 0 : index
    %72 = vector.load %arg2[%c0_48, %c0_49, %c1_50, %c0_51] : memref<2x4x16x16xf32, #tpu.memory_space<vmem>>, vector<2x1x14x14xf32>
    %73 = vector.shape_cast %72 : vector<2x1x14x14xf32> to vector<2x14x14xf32>
    %74 = vector.broadcast %71 : f32 to vector<2x14x14xf32>
    %75 = arith.mulf %74, %73 : vector<2x14x14xf32>
    %c4 = arith.constant 4 : index
    %76 = memref.load %arg1[%c4] : memref<57xf32, #tpu.memory_space<smem>>
    %c0_52 = arith.constant 0 : index
    %c0_53 = arith.constant 0 : index
    %c1_54 = arith.constant 1 : index
    %c1_55 = arith.constant 1 : index
    %77 = vector.load %arg2[%c0_52, %c0_53, %c1_54, %c1_55] : memref<2x4x16x16xf32, #tpu.memory_space<vmem>>, vector<2x1x14x14xf32>
    %78 = vector.shape_cast %77 : vector<2x1x14x14xf32> to vector<2x14x14xf32>
    %79 = vector.broadcast %76 : f32 to vector<2x14x14xf32>
    %80 = arith.mulf %79, %78 : vector<2x14x14xf32>
    %81 = arith.addf %75, %80 : vector<2x14x14xf32>
    %c5 = arith.constant 5 : index
    %82 = memref.load %arg1[%c5] : memref<57xf32, #tpu.memory_space<smem>>
    %c0_56 = arith.constant 0 : index
    %c0_57 = arith.constant 0 : index
    %c1_58 = arith.constant 1 : index
    %c2_59 = arith.constant 2 : index
    %83 = vector.load %arg2[%c0_56, %c0_57, %c1_58, %c2_59] : memref<2x4x16x16xf32, #tpu.memory_space<vmem>>, vector<2x1x14x14xf32>
    %84 = vector.shape_cast %83 : vector<2x1x14x14xf32> to vector<2x14x14xf32>
    %85 = vector.broadcast %82 : f32 to vector<2x14x14xf32>
    %86 = arith.mulf %85, %84 : vector<2x14x14xf32>
    %87 = arith.addf %81, %86 : vector<2x14x14xf32>
    %c12 = arith.constant 12 : index
    %88 = memref.load %arg1[%c12] : memref<57xf32, #tpu.memory_space<smem>>
    %c0_60 = arith.constant 0 : index
    %c1_61 = arith.constant 1 : index
    %c1_62 = arith.constant 1 : index
    %c0_63 = arith.constant 0 : index
    %89 = vector.load %arg2[%c0_60, %c1_61, %c1_62, %c0_63] : memref<2x4x16x16xf32, #tpu.memory_space<vmem>>, vector<2x1x14x14xf32>
    %90 = vector.shape_cast %89 : vector<2x1x14x14xf32> to vector<2x14x14xf32>
    %91 = vector.broadcast %88 : f32 to vector<2x14x14xf32>
    %92 = arith.mulf %91, %90 : vector<2x14x14xf32>
    %93 = arith.addf %87, %92 : vector<2x14x14xf32>
    %c13 = arith.constant 13 : index
    %94 = memref.load %arg1[%c13] : memref<57xf32, #tpu.memory_space<smem>>
    %c0_64 = arith.constant 0 : index
    %c1_65 = arith.constant 1 : index
    %c1_66 = arith.constant 1 : index
    %c1_67 = arith.constant 1 : index
    %95 = vector.load %arg2[%c0_64, %c1_65, %c1_66, %c1_67] : memref<2x4x16x16xf32, #tpu.memory_space<vmem>>, vector<2x1x14x14xf32>
    %96 = vector.shape_cast %95 : vector<2x1x14x14xf32> to vector<2x14x14xf32>
    %97 = vector.broadcast %94 : f32 to vector<2x14x14xf32>
    %98 = arith.mulf %97, %96 : vector<2x14x14xf32>
    %99 = arith.addf %93, %98 : vector<2x14x14xf32>
    %c14 = arith.constant 14 : index
    %100 = memref.load %arg1[%c14] : memref<57xf32, #tpu.memory_space<smem>>
    %c0_68 = arith.constant 0 : index
    %c1_69 = arith.constant 1 : index
    %c1_70 = arith.constant 1 : index
    %c2_71 = arith.constant 2 : index
    %101 = vector.load %arg2[%c0_68, %c1_69, %c1_70, %c2_71] : memref<2x4x16x16xf32, #tpu.memory_space<vmem>>, vector<2x1x14x14xf32>
    %102 = vector.shape_cast %101 : vector<2x1x14x14xf32> to vector<2x14x14xf32>
    %103 = vector.broadcast %100 : f32 to vector<2x14x14xf32>
    %104 = arith.mulf %103, %102 : vector<2x14x14xf32>
    %105 = arith.addf %99, %104 : vector<2x14x14xf32>
    %c21 = arith.constant 21 : index
    %106 = memref.load %arg1[%c21] : memref<57xf32, #tpu.memory_space<smem>>
    %c0_72 = arith.constant 0 : index
    %c2_73 = arith.constant 2 : index
    %c1_74 = arith.constant 1 : index
    %c0_75 = arith.constant 0 : index
    %107 = vector.load %arg2[%c0_72, %c2_73, %c1_74, %c0_75] : memref<2x4x16x16xf32, #tpu.memory_space<vmem>>, vector<2x1x14x14xf32>
    %108 = vector.shape_cast %107 : vector<2x1x14x14xf32> to vector<2x14x14xf32>
    %109 = vector.broadcast %106 : f32 to vector<2x14x14xf32>
    %110 = arith.mulf %109, %108 : vector<2x14x14xf32>
    %111 = arith.addf %105, %110 : vector<2x14x14xf32>
    %c22 = arith.constant 22 : index
    %112 = memref.load %arg1[%c22] : memref<57xf32, #tpu.memory_space<smem>>
    %c0_76 = arith.constant 0 : index
    %c2_77 = arith.constant 2 : index
    %c1_78 = arith.constant 1 : index
    %c1_79 = arith.constant 1 : index
    %113 = vector.load %arg2[%c0_76, %c2_77, %c1_78, %c1_79] : memref<2x4x16x16xf32, #tpu.memory_space<vmem>>, vector<2x1x14x14xf32>
    %114 = vector.shape_cast %113 : vector<2x1x14x14xf32> to vector<2x14x14xf32>
    %115 = vector.broadcast %112 : f32 to vector<2x14x14xf32>
    %116 = arith.mulf %115, %114 : vector<2x14x14xf32>
    %117 = arith.addf %111, %116 : vector<2x14x14xf32>
    %c23 = arith.constant 23 : index
    %118 = memref.load %arg1[%c23] : memref<57xf32, #tpu.memory_space<smem>>
    %c0_80 = arith.constant 0 : index
    %c2_81 = arith.constant 2 : index
    %c1_82 = arith.constant 1 : index
    %c2_83 = arith.constant 2 : index
    %119 = vector.load %arg2[%c0_80, %c2_81, %c1_82, %c2_83] : memref<2x4x16x16xf32, #tpu.memory_space<vmem>>, vector<2x1x14x14xf32>
    %120 = vector.shape_cast %119 : vector<2x1x14x14xf32> to vector<2x14x14xf32>
    %121 = vector.broadcast %118 : f32 to vector<2x14x14xf32>
    %122 = arith.mulf %121, %120 : vector<2x14x14xf32>
    %123 = arith.addf %117, %122 : vector<2x14x14xf32>
    %c30 = arith.constant 30 : index
    %124 = memref.load %arg1[%c30] : memref<57xf32, #tpu.memory_space<smem>>
    %c0_84 = arith.constant 0 : index
    %c3_85 = arith.constant 3 : index
    %c1_86 = arith.constant 1 : index
    %c0_87 = arith.constant 0 : index
    %125 = vector.load %arg2[%c0_84, %c3_85, %c1_86, %c0_87] : memref<2x4x16x16xf32, #tpu.memory_space<vmem>>, vector<2x1x14x14xf32>
    %126 = vector.shape_cast %125 : vector<2x1x14x14xf32> to vector<2x14x14xf32>
    %127 = vector.broadcast %124 : f32 to vector<2x14x14xf32>
    %128 = arith.mulf %127, %126 : vector<2x14x14xf32>
    %129 = arith.addf %123, %128 : vector<2x14x14xf32>
    %c31 = arith.constant 31 : index
    %130 = memref.load %arg1[%c31] : memref<57xf32, #tpu.memory_space<smem>>
    %c0_88 = arith.constant 0 : index
    %c3_89 = arith.constant 3 : index
    %c1_90 = arith.constant 1 : index
    %c1_91 = arith.constant 1 : index
    %131 = vector.load %arg2[%c0_88, %c3_89, %c1_90, %c1_91] : memref<2x4x16x16xf32, #tpu.memory_space<vmem>>, vector<2x1x14x14xf32>
    %132 = vector.shape_cast %131 : vector<2x1x14x14xf32> to vector<2x14x14xf32>
    %133 = vector.broadcast %130 : f32 to vector<2x14x14xf32>
    %134 = arith.mulf %133, %132 : vector<2x14x14xf32>
    %135 = arith.addf %129, %134 : vector<2x14x14xf32>
    %c32 = arith.constant 32 : index
    %136 = memref.load %arg1[%c32] : memref<57xf32, #tpu.memory_space<smem>>
    %c0_92 = arith.constant 0 : index
    %c3_93 = arith.constant 3 : index
    %c1_94 = arith.constant 1 : index
    %c2_95 = arith.constant 2 : index
    %137 = vector.load %arg2[%c0_92, %c3_93, %c1_94, %c2_95] : memref<2x4x16x16xf32, #tpu.memory_space<vmem>>, vector<2x1x14x14xf32>
    %138 = vector.shape_cast %137 : vector<2x1x14x14xf32> to vector<2x14x14xf32>
    %139 = vector.broadcast %136 : f32 to vector<2x14x14xf32>
    %140 = arith.mulf %139, %138 : vector<2x14x14xf32>
    %141 = arith.addf %135, %140 : vector<2x14x14xf32>
    %c6 = arith.constant 6 : index
    %142 = memref.load %arg1[%c6] : memref<57xf32, #tpu.memory_space<smem>>
    %c0_96 = arith.constant 0 : index
    %c0_97 = arith.constant 0 : index
    %c2_98 = arith.constant 2 : index
    %c0_99 = arith.constant 0 : index
    %143 = vector.load %arg2[%c0_96, %c0_97, %c2_98, %c0_99] : memref<2x4x16x16xf32, #tpu.memory_space<vmem>>, vector<2x1x14x14xf32>
    %144 = vector.shape_cast %143 : vector<2x1x14x14xf32> to vector<2x14x14xf32>
    %145 = vector.broadcast %142 : f32 to vector<2x14x14xf32>
    %146 = arith.mulf %145, %144 : vector<2x14x14xf32>
    %c7 = arith.constant 7 : index
    %147 = memref.load %arg1[%c7] : memref<57xf32, #tpu.memory_space<smem>>
    %c0_100 = arith.constant 0 : index
    %c0_101 = arith.constant 0 : index
    %c2_102 = arith.constant 2 : index
    %c1_103 = arith.constant 1 : index
    %148 = vector.load %arg2[%c0_100, %c0_101, %c2_102, %c1_103] : memref<2x4x16x16xf32, #tpu.memory_space<vmem>>, vector<2x1x14x14xf32>
    %149 = vector.shape_cast %148 : vector<2x1x14x14xf32> to vector<2x14x14xf32>
    %150 = vector.broadcast %147 : f32 to vector<2x14x14xf32>
    %151 = arith.mulf %150, %149 : vector<2x14x14xf32>
    %152 = arith.addf %146, %151 : vector<2x14x14xf32>
    %c8 = arith.constant 8 : index
    %153 = memref.load %arg1[%c8] : memref<57xf32, #tpu.memory_space<smem>>
    %c0_104 = arith.constant 0 : index
    %c0_105 = arith.constant 0 : index
    %c2_106 = arith.constant 2 : index
    %c2_107 = arith.constant 2 : index
    %154 = vector.load %arg2[%c0_104, %c0_105, %c2_106, %c2_107] : memref<2x4x16x16xf32, #tpu.memory_space<vmem>>, vector<2x1x14x14xf32>
    %155 = vector.shape_cast %154 : vector<2x1x14x14xf32> to vector<2x14x14xf32>
    %156 = vector.broadcast %153 : f32 to vector<2x14x14xf32>
    %157 = arith.mulf %156, %155 : vector<2x14x14xf32>
    %158 = arith.addf %152, %157 : vector<2x14x14xf32>
    %c15 = arith.constant 15 : index
    %159 = memref.load %arg1[%c15] : memref<57xf32, #tpu.memory_space<smem>>
    %c0_108 = arith.constant 0 : index
    %c1_109 = arith.constant 1 : index
    %c2_110 = arith.constant 2 : index
    %c0_111 = arith.constant 0 : index
    %160 = vector.load %arg2[%c0_108, %c1_109, %c2_110, %c0_111] : memref<2x4x16x16xf32, #tpu.memory_space<vmem>>, vector<2x1x14x14xf32>
    %161 = vector.shape_cast %160 : vector<2x1x14x14xf32> to vector<2x14x14xf32>
    %162 = vector.broadcast %159 : f32 to vector<2x14x14xf32>
    %163 = arith.mulf %162, %161 : vector<2x14x14xf32>
    %164 = arith.addf %158, %163 : vector<2x14x14xf32>
    %c16 = arith.constant 16 : index
    %165 = memref.load %arg1[%c16] : memref<57xf32, #tpu.memory_space<smem>>
    %c0_112 = arith.constant 0 : index
    %c1_113 = arith.constant 1 : index
    %c2_114 = arith.constant 2 : index
    %c1_115 = arith.constant 1 : index
    %166 = vector.load %arg2[%c0_112, %c1_113, %c2_114, %c1_115] : memref<2x4x16x16xf32, #tpu.memory_space<vmem>>, vector<2x1x14x14xf32>
    %167 = vector.shape_cast %166 : vector<2x1x14x14xf32> to vector<2x14x14xf32>
    %168 = vector.broadcast %165 : f32 to vector<2x14x14xf32>
    %169 = arith.mulf %168, %167 : vector<2x14x14xf32>
    %170 = arith.addf %164, %169 : vector<2x14x14xf32>
    %c17 = arith.constant 17 : index
    %171 = memref.load %arg1[%c17] : memref<57xf32, #tpu.memory_space<smem>>
    %c0_116 = arith.constant 0 : index
    %c1_117 = arith.constant 1 : index
    %c2_118 = arith.constant 2 : index
    %c2_119 = arith.constant 2 : index
    %172 = vector.load %arg2[%c0_116, %c1_117, %c2_118, %c2_119] : memref<2x4x16x16xf32, #tpu.memory_space<vmem>>, vector<2x1x14x14xf32>
    %173 = vector.shape_cast %172 : vector<2x1x14x14xf32> to vector<2x14x14xf32>
    %174 = vector.broadcast %171 : f32 to vector<2x14x14xf32>
    %175 = arith.mulf %174, %173 : vector<2x14x14xf32>
    %176 = arith.addf %170, %175 : vector<2x14x14xf32>
    %c24 = arith.constant 24 : index
    %177 = memref.load %arg1[%c24] : memref<57xf32, #tpu.memory_space<smem>>
    %c0_120 = arith.constant 0 : index
    %c2_121 = arith.constant 2 : index
    %c2_122 = arith.constant 2 : index
    %c0_123 = arith.constant 0 : index
    %178 = vector.load %arg2[%c0_120, %c2_121, %c2_122, %c0_123] : memref<2x4x16x16xf32, #tpu.memory_space<vmem>>, vector<2x1x14x14xf32>
    %179 = vector.shape_cast %178 : vector<2x1x14x14xf32> to vector<2x14x14xf32>
    %180 = vector.broadcast %177 : f32 to vector<2x14x14xf32>
    %181 = arith.mulf %180, %179 : vector<2x14x14xf32>
    %182 = arith.addf %176, %181 : vector<2x14x14xf32>
    %c25 = arith.constant 25 : index
    %183 = memref.load %arg1[%c25] : memref<57xf32, #tpu.memory_space<smem>>
    %c0_124 = arith.constant 0 : index
    %c2_125 = arith.constant 2 : index
    %c2_126 = arith.constant 2 : index
    %c1_127 = arith.constant 1 : index
    %184 = vector.load %arg2[%c0_124, %c2_125, %c2_126, %c1_127] : memref<2x4x16x16xf32, #tpu.memory_space<vmem>>, vector<2x1x14x14xf32>
    %185 = vector.shape_cast %184 : vector<2x1x14x14xf32> to vector<2x14x14xf32>
    %186 = vector.broadcast %183 : f32 to vector<2x14x14xf32>
    %187 = arith.mulf %186, %185 : vector<2x14x14xf32>
    %188 = arith.addf %182, %187 : vector<2x14x14xf32>
    %c26 = arith.constant 26 : index
    %189 = memref.load %arg1[%c26] : memref<57xf32, #tpu.memory_space<smem>>
    %c0_128 = arith.constant 0 : index
    %c2_129 = arith.constant 2 : index
    %c2_130 = arith.constant 2 : index
    %c2_131 = arith.constant 2 : index
    %190 = vector.load %arg2[%c0_128, %c2_129, %c2_130, %c2_131] : memref<2x4x16x16xf32, #tpu.memory_space<vmem>>, vector<2x1x14x14xf32>
    %191 = vector.shape_cast %190 : vector<2x1x14x14xf32> to vector<2x14x14xf32>
    %192 = vector.broadcast %189 : f32 to vector<2x14x14xf32>
    %193 = arith.mulf %192, %191 : vector<2x14x14xf32>
    %194 = arith.addf %188, %193 : vector<2x14x14xf32>
    %c33 = arith.constant 33 : index
    %195 = memref.load %arg1[%c33] : memref<57xf32, #tpu.memory_space<smem>>
    %c0_132 = arith.constant 0 : index
    %c3_133 = arith.constant 3 : index
    %c2_134 = arith.constant 2 : index
    %c0_135 = arith.constant 0 : index
    %196 = vector.load %arg2[%c0_132, %c3_133, %c2_134, %c0_135] : memref<2x4x16x16xf32, #tpu.memory_space<vmem>>, vector<2x1x14x14xf32>
    %197 = vector.shape_cast %196 : vector<2x1x14x14xf32> to vector<2x14x14xf32>
    %198 = vector.broadcast %195 : f32 to vector<2x14x14xf32>
    %199 = arith.mulf %198, %197 : vector<2x14x14xf32>
    %200 = arith.addf %194, %199 : vector<2x14x14xf32>
    %c34 = arith.constant 34 : index
    %201 = memref.load %arg1[%c34] : memref<57xf32, #tpu.memory_space<smem>>
    %c0_136 = arith.constant 0 : index
    %c3_137 = arith.constant 3 : index
    %c2_138 = arith.constant 2 : index
    %c1_139 = arith.constant 1 : index
    %202 = vector.load %arg2[%c0_136, %c3_137, %c2_138, %c1_139] : memref<2x4x16x16xf32, #tpu.memory_space<vmem>>, vector<2x1x14x14xf32>
    %203 = vector.shape_cast %202 : vector<2x1x14x14xf32> to vector<2x14x14xf32>
    %204 = vector.broadcast %201 : f32 to vector<2x14x14xf32>
    %205 = arith.mulf %204, %203 : vector<2x14x14xf32>
    %206 = arith.addf %200, %205 : vector<2x14x14xf32>
    %c35 = arith.constant 35 : index
    %207 = memref.load %arg1[%c35] : memref<57xf32, #tpu.memory_space<smem>>
    %c0_140 = arith.constant 0 : index
    %c3_141 = arith.constant 3 : index
    %c2_142 = arith.constant 2 : index
    %c2_143 = arith.constant 2 : index
    %208 = vector.load %arg2[%c0_140, %c3_141, %c2_142, %c2_143] : memref<2x4x16x16xf32, #tpu.memory_space<vmem>>, vector<2x1x14x14xf32>
    %209 = vector.shape_cast %208 : vector<2x1x14x14xf32> to vector<2x14x14xf32>
    %210 = vector.broadcast %207 : f32 to vector<2x14x14xf32>
    %211 = arith.mulf %210, %209 : vector<2x14x14xf32>
    %212 = arith.addf %206, %211 : vector<2x14x14xf32>
    %213 = arith.addf %70, %141 : vector<2x14x14xf32>
    %214 = arith.addf %213, %212 : vector<2x14x14xf32>
    %c36 = arith.constant 36 : index
    %215 = memref.load %arg1[%c36] : memref<57xf32, #tpu.memory_space<smem>>
    %216 = vector.broadcast %215 : f32 to vector<2x14x14xf32>
    %217 = arith.addf %214, %216 : vector<2x14x14xf32>
    %c0_144 = arith.constant 0 : index
    %c0_145 = arith.constant 0 : index
    %c0_146 = arith.constant 0 : index
    %c0_147 = arith.constant 0 : index
    %218 = vector.load %arg3[%c0_144, %c0_145, %c0_146, %c0_147] : memref<2x1x14x14xf32, #tpu.memory_space<vmem>>, vector<2x1x14x14xf32>
    %219 = vector.shape_cast %218 : vector<2x1x14x14xf32> to vector<2x14x14xf32>
    %220 = vector.shape_cast %217 : vector<2x14x14xf32> to vector<2x1x14x14xf32>
    tpu.vector_store %arg3[%c0_144, %c0_145, %c0_146, %c0_147], %220 {strides = array<i32>} : memref<2x1x14x14xf32, #tpu.memory_space<vmem>>, vector<2x1x14x14xf32>,
    %c0_148 = arith.constant 0 : index
    %c0_149 = arith.constant 0 : index
    %c0_150 = arith.constant 0 : index
    %c0_151 = arith.constant 0 : index
    %221 = vector.load %arg3[%c0_148, %c0_149, %c0_150, %c0_151] : memref<2x1x14x14xf32, #tpu.memory_space<vmem>>, vector<2x1x12x12xf32>
    %222 = vector.shape_cast %221 : vector<2x1x12x12xf32> to vector<2x12x12xf32>
    %c37 = arith.constant 37 : index
    %223 = memref.load %arg1[%c37] : memref<57xf32, #tpu.memory_space<smem>>
    %224 = vector.broadcast %223 : f32 to vector<2x12x12xf32>
    %225 = arith.mulf %224, %222 : vector<2x12x12xf32>
    %c47 = arith.constant 47 : index
    %226 = memref.load %arg1[%c47] : memref<57xf32, #tpu.memory_space<smem>>
    %227 = vector.broadcast %226 : f32 to vector<2x12x12xf32>
    %228 = arith.mulf %227, %222 : vector<2x12x12xf32>
    %c0_152 = arith.constant 0 : index
    %c0_153 = arith.constant 0 : index
    %c0_154 = arith.constant 0 : index
    %c1_155 = arith.constant 1 : index
    %229 = vector.load %arg3[%c0_152, %c0_153, %c0_154, %c1_155] : memref<2x1x14x14xf32, #tpu.memory_space<vmem>>, vector<2x1x12x12xf32>
    %230 = vector.shape_cast %229 : vector<2x1x12x12xf32> to vector<2x12x12xf32>
    %c38 = arith.constant 38 : index
    %231 = memref.load %arg1[%c38] : memref<57xf32, #tpu.memory_space<smem>>
    %232 = vector.broadcast %231 : f32 to vector<2x12x12xf32>
    %233 = arith.mulf %232, %230 : vector<2x12x12xf32>
    %c48 = arith.constant 48 : index
    %234 = memref.load %arg1[%c48] : memref<57xf32, #tpu.memory_space<smem>>
    %235 = vector.broadcast %234 : f32 to vector<2x12x12xf32>
    %236 = arith.mulf %235, %230 : vector<2x12x12xf32>
    %237 = arith.addf %225, %233 : vector<2x12x12xf32>
    %238 = arith.addf %228, %236 : vector<2x12x12xf32>
    %c0_156 = arith.constant 0 : index
    %c0_157 = arith.constant 0 : index
    %c0_158 = arith.constant 0 : index
    %c2_159 = arith.constant 2 : index
    %239 = vector.load %arg3[%c0_156, %c0_157, %c0_158, %c2_159] : memref<2x1x14x14xf32, #tpu.memory_space<vmem>>, vector<2x1x12x12xf32>
    %240 = vector.shape_cast %239 : vector<2x1x12x12xf32> to vector<2x12x12xf32>
    %c39 = arith.constant 39 : index
    %241 = memref.load %arg1[%c39] : memref<57xf32, #tpu.memory_space<smem>>
    %242 = vector.broadcast %241 : f32 to vector<2x12x12xf32>
    %243 = arith.mulf %242, %240 : vector<2x12x12xf32>
    %c49 = arith.constant 49 : index
    %244 = memref.load %arg1[%c49] : memref<57xf32, #tpu.memory_space<smem>>
    %245 = vector.broadcast %244 : f32 to vector<2x12x12xf32>
    %246 = arith.mulf %245, %240 : vector<2x12x12xf32>
    %247 = arith.addf %237, %243 : vector<2x12x12xf32>
    %248 = arith.addf %238, %246 : vector<2x12x12xf32>
    %c0_160 = arith.constant 0 : index
    %c0_161 = arith.constant 0 : index
    %c1_162 = arith.constant 1 : index
    %c0_163 = arith.constant 0 : index
    %249 = vector.load %arg3[%c0_160, %c0_161, %c1_162, %c0_163] : memref<2x1x14x14xf32, #tpu.memory_space<vmem>>, vector<2x1x12x12xf32>
    %250 = vector.shape_cast %249 : vector<2x1x12x12xf32> to vector<2x12x12xf32>
    %c40 = arith.constant 40 : index
    %251 = memref.load %arg1[%c40] : memref<57xf32, #tpu.memory_space<smem>>
    %252 = vector.broadcast %251 : f32 to vector<2x12x12xf32>
    %253 = arith.mulf %252, %250 : vector<2x12x12xf32>
    %c50 = arith.constant 50 : index
    %254 = memref.load %arg1[%c50] : memref<57xf32, #tpu.memory_space<smem>>
    %255 = vector.broadcast %254 : f32 to vector<2x12x12xf32>
    %256 = arith.mulf %255, %250 : vector<2x12x12xf32>
    %c0_164 = arith.constant 0 : index
    %c0_165 = arith.constant 0 : index
    %c1_166 = arith.constant 1 : index
    %c1_167 = arith.constant 1 : index
    %257 = vector.load %arg3[%c0_164, %c0_165, %c1_166, %c1_167] : memref<2x1x14x14xf32, #tpu.memory_space<vmem>>, vector<2x1x12x12xf32>
    %258 = vector.shape_cast %257 : vector<2x1x12x12xf32> to vector<2x12x12xf32>
    %c41 = arith.constant 41 : index
    %259 = memref.load %arg1[%c41] : memref<57xf32, #tpu.memory_space<smem>>
    %260 = vector.broadcast %259 : f32 to vector<2x12x12xf32>
    %261 = arith.mulf %260, %258 : vector<2x12x12xf32>
    %c51 = arith.constant 51 : index
    %262 = memref.load %arg1[%c51] : memref<57xf32, #tpu.memory_space<smem>>
    %263 = vector.broadcast %262 : f32 to vector<2x12x12xf32>
    %264 = arith.mulf %263, %258 : vector<2x12x12xf32>
    %265 = arith.addf %253, %261 : vector<2x12x12xf32>
    %266 = arith.addf %256, %264 : vector<2x12x12xf32>
    %c0_168 = arith.constant 0 : index
    %c0_169 = arith.constant 0 : index
    %c1_170 = arith.constant 1 : index
    %c2_171 = arith.constant 2 : index
    %267 = vector.load %arg3[%c0_168, %c0_169, %c1_170, %c2_171] : memref<2x1x14x14xf32, #tpu.memory_space<vmem>>, vector<2x1x12x12xf32>
    %268 = vector.shape_cast %267 : vector<2x1x12x12xf32> to vector<2x12x12xf32>
    %c42 = arith.constant 42 : index
    %269 = memref.load %arg1[%c42] : memref<57xf32, #tpu.memory_space<smem>>
    %270 = vector.broadcast %269 : f32 to vector<2x12x12xf32>
    %271 = arith.mulf %270, %268 : vector<2x12x12xf32>
    %c52 = arith.constant 52 : index
    %272 = memref.load %arg1[%c52] : memref<57xf32, #tpu.memory_space<smem>>
    %273 = vector.broadcast %272 : f32 to vector<2x12x12xf32>
    %274 = arith.mulf %273, %268 : vector<2x12x12xf32>
    %275 = arith.addf %265, %271 : vector<2x12x12xf32>
    %276 = arith.addf %266, %274 : vector<2x12x12xf32>
    %c0_172 = arith.constant 0 : index
    %c0_173 = arith.constant 0 : index
    %c2_174 = arith.constant 2 : index
    %c0_175 = arith.constant 0 : index
    %277 = vector.load %arg3[%c0_172, %c0_173, %c2_174, %c0_175] : memref<2x1x14x14xf32, #tpu.memory_space<vmem>>, vector<2x1x12x12xf32>
    %278 = vector.shape_cast %277 : vector<2x1x12x12xf32> to vector<2x12x12xf32>
    %c43 = arith.constant 43 : index
    %279 = memref.load %arg1[%c43] : memref<57xf32, #tpu.memory_space<smem>>
    %280 = vector.broadcast %279 : f32 to vector<2x12x12xf32>
    %281 = arith.mulf %280, %278 : vector<2x12x12xf32>
    %c53 = arith.constant 53 : index
    %282 = memref.load %arg1[%c53] : memref<57xf32, #tpu.memory_space<smem>>
    %283 = vector.broadcast %282 : f32 to vector<2x12x12xf32>
    %284 = arith.mulf %283, %278 : vector<2x12x12xf32>
    %c0_176 = arith.constant 0 : index
    %c0_177 = arith.constant 0 : index
    %c2_178 = arith.constant 2 : index
    %c1_179 = arith.constant 1 : index
    %285 = vector.load %arg3[%c0_176, %c0_177, %c2_178, %c1_179] : memref<2x1x14x14xf32, #tpu.memory_space<vmem>>, vector<2x1x12x12xf32>
    %286 = vector.shape_cast %285 : vector<2x1x12x12xf32> to vector<2x12x12xf32>
    %c44 = arith.constant 44 : index
    %287 = memref.load %arg1[%c44] : memref<57xf32, #tpu.memory_space<smem>>
    %288 = vector.broadcast %287 : f32 to vector<2x12x12xf32>
    %289 = arith.mulf %288, %286 : vector<2x12x12xf32>
    %c54 = arith.constant 54 : index
    %290 = memref.load %arg1[%c54] : memref<57xf32, #tpu.memory_space<smem>>
    %291 = vector.broadcast %290 : f32 to vector<2x12x12xf32>
    %292 = arith.mulf %291, %286 : vector<2x12x12xf32>
    %293 = arith.addf %281, %289 : vector<2x12x12xf32>
    %294 = arith.addf %284, %292 : vector<2x12x12xf32>
    %c0_180 = arith.constant 0 : index
    %c0_181 = arith.constant 0 : index
    %c2_182 = arith.constant 2 : index
    %c2_183 = arith.constant 2 : index
    %295 = vector.load %arg3[%c0_180, %c0_181, %c2_182, %c2_183] : memref<2x1x14x14xf32, #tpu.memory_space<vmem>>, vector<2x1x12x12xf32>
    %296 = vector.shape_cast %295 : vector<2x1x12x12xf32> to vector<2x12x12xf32>
    %c45 = arith.constant 45 : index
    %297 = memref.load %arg1[%c45] : memref<57xf32, #tpu.memory_space<smem>>
    %298 = vector.broadcast %297 : f32 to vector<2x12x12xf32>
    %299 = arith.mulf %298, %296 : vector<2x12x12xf32>
    %c55 = arith.constant 55 : index
    %300 = memref.load %arg1[%c55] : memref<57xf32, #tpu.memory_space<smem>>
    %301 = vector.broadcast %300 : f32 to vector<2x12x12xf32>
    %302 = arith.mulf %301, %296 : vector<2x12x12xf32>
    %303 = arith.addf %293, %299 : vector<2x12x12xf32>
    %304 = arith.addf %294, %302 : vector<2x12x12xf32>
    %305 = arith.addf %247, %275 : vector<2x12x12xf32>
    %306 = arith.addf %248, %276 : vector<2x12x12xf32>
    %307 = arith.addf %305, %303 : vector<2x12x12xf32>
    %308 = arith.addf %306, %304 : vector<2x12x12xf32>
    %c46 = arith.constant 46 : index
    %309 = memref.load %arg1[%c46] : memref<57xf32, #tpu.memory_space<smem>>
    %310 = vector.broadcast %309 : f32 to vector<2x12x12xf32>
    %311 = arith.addf %307, %310 : vector<2x12x12xf32>
    %c0_184 = arith.constant 0 : index
    %c0_185 = arith.constant 0 : index
    %c0_186 = arith.constant 0 : index
    %c0_187 = arith.constant 0 : index
    %312 = vector.load %arg4[%c0_184, %c0_185, %c0_186, %c0_187] : memref<2x2x12x12xf32, #tpu.memory_space<vmem>>, vector<2x1x12x12xf32>
    %313 = vector.shape_cast %312 : vector<2x1x12x12xf32> to vector<2x12x12xf32>
    %314 = vector.shape_cast %311 : vector<2x12x12xf32> to vector<2x1x12x12xf32>
    tpu.vector_store %arg4[%c0_184, %c0_185, %c0_186, %c0_187], %314 {strides = array<i32>} : memref<2x2x12x12xf32, #tpu.memory_space<vmem>>, vector<2x1x12x12xf32>,
    %c56 = arith.constant 56 : index
    %315 = memref.load %arg1[%c56] : memref<57xf32, #tpu.memory_space<smem>>
    %316 = vector.broadcast %315 : f32 to vector<2x12x12xf32>
    %317 = arith.addf %308, %316 : vector<2x12x12xf32>
    %c0_188 = arith.constant 0 : index
    %c1_189 = arith.constant 1 : index
    %c0_190 = arith.constant 0 : index
    %c0_191 = arith.constant 0 : index
    %318 = vector.load %arg4[%c0_188, %c1_189, %c0_190, %c0_191] : memref<2x2x12x12xf32, #tpu.memory_space<vmem>>, vector<2x1x12x12xf32>
    %319 = vector.shape_cast %318 : vector<2x1x12x12xf32> to vector<2x12x12xf32>
    %320 = vector.shape_cast %317 : vector<2x12x12xf32> to vector<2x1x12x12xf32>
    tpu.vector_store %arg4[%c0_188, %c1_189, %c0_190, %c0_191], %320 {strides = array<i32>} : memref<2x2x12x12xf32, #tpu.memory_space<vmem>>, vector<2x1x12x12xf32>,
    return
  }
  func.func @transform_0(%arg0: i32) -> i32 {
    %c0_i32 = arith.constant 0 : i32
    %c0_i32_0 = arith.constant 0 : i32
    return %c0_i32 : i32
  }
  func.func @transform_1(%arg0: i32) -> (i32, i32, i32, i32) {
    %c0_i32 = arith.constant 0 : i32
    %c0_i32_0 = arith.constant 0 : i32
    %c0_i32_1 = arith.constant 0 : i32
    %c0_i32_2 = arith.constant 0 : i32
    return %arg0, %c0_i32, %c0_i32_0, %c0_i32_1 : i32, i32, i32, i32
  }
  func.func @transform_2(%arg0: i32) -> (i32, i32, i32, i32) {
    %c0_i32 = arith.constant 0 : i32
    %c0_i32_0 = arith.constant 0 : i32
    %c0_i32_1 = arith.constant 0 : i32
    %c0_i32_2 = arith.constant 0 : i32
    return %arg0, %c0_i32, %c0_i32_0, %c0_i32_1 : i32, i32, i32, i32
  }
  func.func @transform_3(%arg0: i32) -> (i32, i32, i32, i32) {
    %c0_i32 = arith.constant 0 : i32
    %c0_i32_0 = arith.constant 0 : i32
    %c0_i32_1 = arith.constant 0 : i32
    %c0_i32_2 = arith.constant 0 : i32
    return %arg0, %c0_i32, %c0_i32_0, %c0_i32_1 : i32, i32, i32, i32
  }
}

</mosaic_0001>

<llo_original>
// kernel: _pallas_forward.1
$region0: #{_pallas_forward.1}
  #allocation0 [shape = 'u32[]', space=smem, size = 0x4, offset = 0x4, fixed_abs, tag = 'smem constant byte address 0x4 - core index']
  #allocation1 [shape = 'u32[144,128]{1,0:T(1,128)}', space=vmem, size = 0x12000, scoped, tag = 'internal scratch']
  %s0 = inlined_call_operand.vmem [shape: f32[57], index: 0, kind: input, shape index: {}]
  %s1 = inlined_call_operand.hbm [shape: f32[2,4,16,16], index: 1, kind: input, shape index: {}]
  %s2 = inlined_call_operand.vmem [shape: f32[2,1,14,14], index: 2, kind: output, shape index: {0}]
  %s3 = inlined_call_operand.vmem [shape: f32[2,2,12,12], index: 3, kind: output, shape index: {1}]
  %4 = xla_tuple %s2, %s3
  %s5 = sld [smem:[#allocation0]]
  $region34: #{_pallas_forward.1} parent=0
    _
  %s7 = ssub.s32 1, %s5
  %s8 = scalar_select 0, %s7, %s5
  $region1: #{_pallas_forward.1} parent=0
    #allocation2 [shape = 'u8[512]{0}', space=smem, size = 0x200, scoped, tag = 'input window, operand 0, single buffered']
    #allocation3 [shape = 's32[1]{0}', space=sflag, size = 0x4, scoped, tag = 'scoped memory for _pallas_forward.1']
    #allocation4 [shape = 's32[1]{0}', space=sflag, size = 0x4, scoped, tag = 'scoped memory for _pallas_forward.1']
    #allocation5 [shape = 'u8[65536]{0}', space=vmem, size = 0x10000, scoped, tag = 'input window, operand 1, single buffered']
    %9 = vsyncpa [#allocation4], 0
    %10 = vsyncpa [#allocation3], 0
    // Predicated region
    $region2: #{_pallas_forward.1} parent=1 // pred_check
      _
    $region3: #{_pallas_forward.1} parent=1 // pred_check_branch
      %12 = sbr.rel (0) target = $region5
    $region4: #{_pallas_forward.1} parent=1 // pred_region
      %s14 = ssub.s32 16, 16
      %15 = vsyncadd [#allocation4], %s14
      %s17 = sshll.u32 %s0, 4
      %s18 = int_to_ptr.vmem [resolvable:$true] %s17
      %20 = dma.vmem_to_smem %s18, 16, [#allocation2], [#allocation4]
    $region5: #{_pallas_forward.1} parent=1 // pred_fallthru
      _
    // Predicated region
    $region6: #{_pallas_forward.1} parent=1 // pred_check
      _
    $region7: #{_pallas_forward.1} parent=1 // pred_check_branch
      %22 = sbr.rel (0) target = $region9
    $region8: #{_pallas_forward.1} parent=1 // pred_region
      %s24 = ssub.s32 2048, 2048
      %25 = vsyncadd [#allocation3], %s24
      %s26 = sshll.u32 [#allocation5], 4
      %s27 = int_to_ptr.vmem [resolvable:$true] %s26
      %32 = dma.hbm_to_vmem [thread:$0]  %s1, 2048, %s27, [#allocation3], 128, 128, 8
    $region9: #{_pallas_forward.1} parent=1 // pred_fallthru
      _
    // Predicated region
    $region10: #{_pallas_forward.1} parent=1 // pred_check
      _
    $region11: #{_pallas_forward.1} parent=1 // pred_check_branch
      %34 = sbr.rel (0) target = $region13
    $region12: #{_pallas_forward.1} parent=1 // pred_region
      %35 = dma.done [#allocation4], 16
    $region13: #{_pallas_forward.1} parent=1 // pred_fallthru
      _
    // Predicated region
    $region14: #{_pallas_forward.1} parent=1 // pred_check
      _
    $region15: #{_pallas_forward.1} parent=1 // pred_check_branch
      %37 = sbr.rel (0) target = $region17
    $region16: #{_pallas_forward.1} parent=1 // pred_region
      %38 = dma.done [#allocation3], 2048
    $region17: #{_pallas_forward.1} parent=1 // pred_fallthru
      _
    %39 = sfence
    %s40 = sld [smem:[#allocation2]]
    %v41 = vld [vmem:[#allocation5] sm:$0xff]
    %v42 = vld [vmem:[#allocation5 + $0x8] sm:$0x3f]
    %v43 = vld [vmem:[#allocation5 + $0x40] sm:$0xff]
    %v44 = vld [vmem:[#allocation5 + $0x48] sm:$0x3f]
    %v45 = vstv %s40
    %v46 = vmul.f32 %v45, %v41
    %v47 = vmul.f32 %v45, %v42
    %v48 = vmul.f32 %v45, %v43
    %v49 = vmul.f32 %v45, %v44
    %s50 = sld [smem:[#allocation2 + $0x1]]
    %v51 = vstv %s50
    %v52 = vmul.f32 %v51, %v41
    %v53 = vmul.f32 %v51, %v42
    %v54 = vmul.f32 %v51, %v43
    %v55 = vmul.f32 %v51, %v44
    %60 = vrot.lane.b32.xlu0 %v52, 127
    %v61 = vpop.permute.xlu0 %60
    %62 = vrot.lane.b32.xlu0 %v53, 127
    %v63 = vpop.permute.xlu0 %62
    %64 = vrot.lane.b32.xlu0 %v54, 127
    %v65 = vpop.permute.xlu0 %64
    %66 = vrot.lane.b32.xlu0 %v55, 127
    %v67 = vpop.permute.xlu0 %66
    %v72 = vadd.f32 %v46, %v61
    %v73 = vadd.f32 %v47, %v63
    %v74 = vadd.f32 %v48, %v65
    %v75 = vadd.f32 %v49, %v67
    %s76 = sld [smem:[#allocation2 + $0x2]]
    %v77 = vstv %s76
    %v78 = vmul.f32 %v77, %v41
    %v79 = vmul.f32 %v77, %v42
    %v80 = vmul.f32 %v77, %v43
    %v81 = vmul.f32 %v77, %v44
    %86 = vrot.lane.b32.xlu0 %v78, 126
    %v87 = vpop.permute.xlu0 %86
    %88 = vrot.lane.b32.xlu0 %v79, 126
    %v89 = vpop.permute.xlu0 %88
    %90 = vrot.lane.b32.xlu0 %v80, 126
    %v91 = vpop.permute.xlu0 %90
    %92 = vrot.lane.b32.xlu0 %v81, 126
    %v93 = vpop.permute.xlu0 %92
    %v98 = vadd.f32 %v72, %v87
    %v99 = vadd.f32 %v73, %v89
    %v100 = vadd.f32 %v74, %v91
    %v101 = vadd.f32 %v75, %v93
    %s102 = sld [smem:[#allocation2 + $0x9]]
    %s103 = scalar_lea.vmem [#allocation5], 16
    %v104 = vld [vmem:[%s103] sm:$0xff]
    %v105 = vld [vmem:[%s103 + $0x8] sm:$0x3f]
    %v106 = vld [vmem:[%s103 + $0x40] sm:$0xff]
    %v107 = vld [vmem:[%s103 + $0x48] sm:$0x3f]
    %v108 = vstv %s102
    %v109 = vmul.f32 %v108, %v104
    %v110 = vmul.f32 %v108, %v105
    %v111 = vmul.f32 %v108, %v106
    %v112 = vmul.f32 %v108, %v107
    %v113 = vadd.f32 %v98, %v109
    %v114 = vadd.f32 %v99, %v110
    %v115 = vadd.f32 %v100, %v111
    %v116 = vadd.f32 %v101, %v112
    %s117 = sld [smem:[#allocation2 + $0xa]]
    %v118 = vstv %s117
    %v119 = vmul.f32 %v118, %v104
    %v120 = vmul.f32 %v118, %v105
    %v121 = vmul.f32 %v118, %v106
    %v122 = vmul.f32 %v118, %v107
    %127 = vrot.lane.b32.xlu0 %v119, 127
    %v128 = vpop.permute.xlu0 %127
    %129 = vrot.lane.b32.xlu0 %v120, 127
    %v130 = vpop.permute.xlu0 %129
    %131 = vrot.lane.b32.xlu0 %v121, 127
    %v132 = vpop.permute.xlu0 %131
    %133 = vrot.lane.b32.xlu0 %v122, 127
    %v134 = vpop.permute.xlu0 %133
    %v139 = vadd.f32 %v113, %v128
    %v140 = vadd.f32 %v114, %v130
    %v141 = vadd.f32 %v115, %v132
    %v142 = vadd.f32 %v116, %v134
    %s143 = sld [smem:[#allocation2 + $0xb]]
    %v144 = vstv %s143
    %v145 = vmul.f32 %v144, %v104
    %v146 = vmul.f32 %v144, %v105
    %v147 = vmul.f32 %v144, %v106
    %v148 = vmul.f32 %v144, %v107
    %153 = vrot.lane.b32.xlu0 %v145, 126
    %v154 = vpop.permute.xlu0 %153
    %155 = vrot.lane.b32.xlu0 %v146, 126
    %v156 = vpop.permute.xlu0 %155
    %157 = vrot.lane.b32.xlu0 %v147, 126
    %v158 = vpop.permute.xlu0 %157
    %159 = vrot.lane.b32.xlu0 %v148, 126
    %v160 = vpop.permute.xlu0 %159
    %v165 = vadd.f32 %v139, %v154
    %v166 = vadd.f32 %v140, %v156
    %v167 = vadd.f32 %v141, %v158
    %v168 = vadd.f32 %v142, %v160
    %s169 = sld [smem:[#allocation2 + $0x12]]
    %s170 = scalar_lea.vmem [#allocation5], 32
    %v171 = vld [vmem:[%s170] sm:$0xff]
    %v172 = vld [vmem:[%s170 + $0x8] sm:$0x3f]
    %v173 = vld [vmem:[%s170 + $0x40] sm:$0xff]
    %v174 = vld [vmem:[%s170 + $0x48] sm:$0x3f]
    %v175 = vstv %s169
    %v176 = vmul.f32 %v175, %v171
    %v177 = vmul.f32 %v175, %v172
    %v178 = vmul.f32 %v175, %v173
    %v179 = vmul.f32 %v175, %v174
    %v180 = vadd.f32 %v165, %v176
    %v181 = vadd.f32 %v166, %v177
    %v182 = vadd.f32 %v167, %v178
    %v183 = vadd.f32 %v168, %v179
    %s184 = sld [smem:[#allocation2 + $0x13]]
    %v185 = vstv %s184
    %v186 = vmul.f32 %v185, %v171
    %v187 = vmul.f32 %v185, %v172
    %v188 = vmul.f32 %v185, %v173
    %v189 = vmul.f32 %v185, %v174
    %194 = vrot.lane.b32.xlu0 %v186, 127
    %v195 = vpop.permute.xlu0 %194
    %196 = vrot.lane.b32.xlu0 %v187, 127
    %v197 = vpop.permute.xlu0 %196
    %198 = vrot.lane.b32.xlu0 %v188, 127
    %v199 = vpop.permute.xlu0 %198
    %200 = vrot.lane.b32.xlu0 %v189, 127
    %v201 = vpop.permute.xlu0 %200
    %v206 = vadd.f32 %v180, %v195
    %v207 = vadd.f32 %v181, %v197
    %v208 = vadd.f32 %v182, %v199
    %v209 = vadd.f32 %v183, %v201
    %s210 = sld [smem:[#allocation2 + $0x14]]
    %v211 = vstv %s210
    %v212 = vmul.f32 %v211, %v171
    %v213 = vmul.f32 %v211, %v172
    %v214 = vmul.f32 %v211, %v173
    %v215 = vmul.f32 %v211, %v174
    %220 = vrot.lane.b32.xlu0 %v212, 126
    %v221 = vpop.permute.xlu0 %220
    %222 = vrot.lane.b32.xlu0 %v213, 126
    %v223 = vpop.permute.xlu0 %222
    %224 = vrot.lane.b32.xlu0 %v214, 126
    %v225 = vpop.permute.xlu0 %224
    %226 = vrot.lane.b32.xlu0 %v215, 126
    %v227 = vpop.permute.xlu0 %226
    %v232 = vadd.f32 %v206, %v221
    %v233 = vadd.f32 %v207, %v223
    %v234 = vadd.f32 %v208, %v225
    %v235 = vadd.f32 %v209, %v227
    %s236 = sld [smem:[#allocation2 + $0x1b]]
    %s237 = scalar_lea.vmem [#allocation5], 48
    %v238 = vld [vmem:[%s237] sm:$0xff]
    %v239 = vld [vmem:[%s237 + $0x8] sm:$0x3f]
    %v240 = vld [vmem:[%s237 + $0x40] sm:$0xff]
    %v241 = vld [vmem:[%s237 + $0x48] sm:$0x3f]
    %v242 = vstv %s236
    %v243 = vmul.f32 %v242, %v238
    %v244 = vmul.f32 %v242, %v239
    %v245 = vmul.f32 %v242, %v240
    %v246 = vmul.f32 %v242, %v241
    %v247 = vadd.f32 %v232, %v243
    %v248 = vadd.f32 %v233, %v244
    %v249 = vadd.f32 %v234, %v245
    %v250 = vadd.f32 %v235, %v246
    %s251 = sld [smem:[#allocation2 + $0x1c]]
    %v252 = vstv %s251
    %v253 = vmul.f32 %v252, %v238
    %v254 = vmul.f32 %v252, %v239
    %v255 = vmul.f32 %v252, %v240
    %v256 = vmul.f32 %v252, %v241
    %261 = vrot.lane.b32.xlu0 %v253, 127
    %v262 = vpop.permute.xlu0 %261
    %263 = vrot.lane.b32.xlu0 %v254, 127
    %v264 = vpop.permute.xlu0 %263
    %265 = vrot.lane.b32.xlu0 %v255, 127
    %v266 = vpop.permute.xlu0 %265
    %267 = vrot.lane.b32.xlu0 %v256, 127
    %v268 = vpop.permute.xlu0 %267
    %v273 = vadd.f32 %v247, %v262
    %v274 = vadd.f32 %v248, %v264
    %v275 = vadd.f32 %v249, %v266
    %v276 = vadd.f32 %v250, %v268
    %s277 = sld [smem:[#allocation2 + $0x1d]]
    %v278 = vstv %s277
    %v279 = vmul.f32 %v278, %v238
    %v280 = vmul.f32 %v278, %v239
    %v281 = vmul.f32 %v278, %v240
    %v282 = vmul.f32 %v278, %v241
    %287 = vrot.lane.b32.xlu0 %v279, 126
    %v288 = vpop.permute.xlu0 %287
    %289 = vrot.lane.b32.xlu0 %v280, 126
    %v290 = vpop.permute.xlu0 %289
    %291 = vrot.lane.b32.xlu0 %v281, 126
    %v292 = vpop.permute.xlu0 %291
    %293 = vrot.lane.b32.xlu0 %v282, 126
    %v294 = vpop.permute.xlu0 %293
    %v299 = vadd.f32 %v273, %v288
    %v300 = vadd.f32 %v274, %v290
    %v301 = vadd.f32 %v275, %v292
    %v302 = vadd.f32 %v276, %v294
    %s303 = sld [smem:[#allocation2 + $0x3]]
    %v304 = vld [vmem:[#allocation5 + $0x1] sm:$0xff]
    %v305 = vld [vmem:[#allocation5 + $0x9] sm:$0x3f]
    %v306 = vld [vmem:[#allocation5 + $0x41] sm:$0xff]
    %v307 = vld [vmem:[#allocation5 + $0x49] sm:$0x3f]
    %v308 = vstv %s303
    %v309 = vmul.f32 %v308, %v304
    %v310 = vmul.f32 %v308, %v305
    %v311 = vmul.f32 %v308, %v306
    %v312 = vmul.f32 %v308, %v307
    %s313 = sld [smem:[#allocation2 + $0x4]]
    %v314 = vstv %s313
    %v315 = vmul.f32 %v314, %v304
    %v316 = vmul.f32 %v314, %v305
    %v317 = vmul.f32 %v314, %v306
    %v318 = vmul.f32 %v314, %v307
    %323 = vrot.lane.b32.xlu0 %v315, 127
    %v324 = vpop.permute.xlu0 %323
    %325 = vrot.lane.b32.xlu0 %v316, 127
    %v326 = vpop.permute.xlu0 %325
    %327 = vrot.lane.b32.xlu0 %v317, 127
    %v328 = vpop.permute.xlu0 %327
    %329 = vrot.lane.b32.xlu0 %v318, 127
    %v330 = vpop.permute.xlu0 %329
    %v335 = vadd.f32 %v309, %v324
    %v336 = vadd.f32 %v310, %v326
    %v337 = vadd.f32 %v311, %v328
    %v338 = vadd.f32 %v312, %v330
    %s339 = sld [smem:[#allocation2 + $0x5]]
    %v340 = vstv %s339
    %v341 = vmul.f32 %v340, %v304
    %v342 = vmul.f32 %v340, %v305
    %v343 = vmul.f32 %v340, %v306
    %v344 = vmul.f32 %v340, %v307
    %349 = vrot.lane.b32.xlu0 %v341, 126
    %v350 = vpop.permute.xlu0 %349
    %351 = vrot.lane.b32.xlu0 %v342, 126
    %v352 = vpop.permute.xlu0 %351
    %353 = vrot.lane.b32.xlu0 %v343, 126
    %v354 = vpop.permute.xlu0 %353
    %355 = vrot.lane.b32.xlu0 %v344, 126
    %v356 = vpop.permute.xlu0 %355
    %v361 = vadd.f32 %v335, %v350
    %v362 = vadd.f32 %v336, %v352
    %v363 = vadd.f32 %v337, %v354
    %v364 = vadd.f32 %v338, %v356
    %s365 = sld [smem:[#allocation2 + $0xc]]
    %v366 = vld [vmem:[%s103 + $0x1] sm:$0xff]
    %v367 = vld [vmem:[%s103 + $0x9] sm:$0x3f]
    %v368 = vld [vmem:[%s103 + $0x41] sm:$0xff]
    %v369 = vld [vmem:[%s103 + $0x49] sm:$0x3f]
    %v370 = vstv %s365
    %v371 = vmul.f32 %v370, %v366
    %v372 = vmul.f32 %v370, %v367
    %v373 = vmul.f32 %v370, %v368
    %v374 = vmul.f32 %v370, %v369
    %v375 = vadd.f32 %v361, %v371
    %v376 = vadd.f32 %v362, %v372
    %v377 = vadd.f32 %v363, %v373
    %v378 = vadd.f32 %v364, %v374
    %s379 = sld [smem:[#allocation2 + $0xd]]
    %v380 = vstv %s379
    %v381 = vmul.f32 %v380, %v366
    %v382 = vmul.f32 %v380, %v367
    %v383 = vmul.f32 %v380, %v368
    %v384 = vmul.f32 %v380, %v369
    %389 = vrot.lane.b32.xlu0 %v381, 127
    %v390 = vpop.permute.xlu0 %389
    %391 = vrot.lane.b32.xlu0 %v382, 127
    %v392 = vpop.permute.xlu0 %391
    %393 = vrot.lane.b32.xlu0 %v383, 127
    %v394 = vpop.permute.xlu0 %393
    %395 = vrot.lane.b32.xlu0 %v384, 127
    %v396 = vpop.permute.xlu0 %395
    %v401 = vadd.f32 %v375, %v390
    %v402 = vadd.f32 %v376, %v392
    %v403 = vadd.f32 %v377, %v394
    %v404 = vadd.f32 %v378, %v396
    %s405 = sld [smem:[#allocation2 + $0xe]]
    %v406 = vstv %s405
    %v407 = vmul.f32 %v406, %v366
    %v408 = vmul.f32 %v406, %v367
    %v409 = vmul.f32 %v406, %v368
    %v410 = vmul.f32 %v406, %v369
    %415 = vrot.lane.b32.xlu0 %v407, 126
    %v416 = vpop.permute.xlu0 %415
    %417 = vrot.lane.b32.xlu0 %v408, 126
    %v418 = vpop.permute.xlu0 %417
    %419 = vrot.lane.b32.xlu0 %v409, 126
    %v420 = vpop.permute.xlu0 %419
    %421 = vrot.lane.b32.xlu0 %v410, 126
    %v422 = vpop.permute.xlu0 %421
    %v427 = vadd.f32 %v401, %v416
    %v428 = vadd.f32 %v402, %v418
    %v429 = vadd.f32 %v403, %v420
    %v430 = vadd.f32 %v404, %v422
    %s431 = sld [smem:[#allocation2 + $0x15]]
    %v432 = vld [vmem:[%s170 + $0x1] sm:$0xff]
    %v433 = vld [vmem:[%s170 + $0x9] sm:$0x3f]
    %v434 = vld [vmem:[%s170 + $0x41] sm:$0xff]
    %v435 = vld [vmem:[%s170 + $0x49] sm:$0x3f]
    %v436 = vstv %s431
    %v437 = vmul.f32 %v436, %v432
    %v438 = vmul.f32 %v436, %v433
    %v439 = vmul.f32 %v436, %v434
    %v440 = vmul.f32 %v436, %v435
    %v441 = vadd.f32 %v427, %v437
    %v442 = vadd.f32 %v428, %v438
    %v443 = vadd.f32 %v429, %v439
    %v444 = vadd.f32 %v430, %v440
    %s445 = sld [smem:[#allocation2 + $0x16]]
    %v446 = vstv %s445
    %v447 = vmul.f32 %v446, %v432
    %v448 = vmul.f32 %v446, %v433
    %v449 = vmul.f32 %v446, %v434
    %v450 = vmul.f32 %v446, %v435
    %455 = vrot.lane.b32.xlu0 %v447, 127
    %v456 = vpop.permute.xlu0 %455
    %457 = vrot.lane.b32.xlu0 %v448, 127
    %v458 = vpop.permute.xlu0 %457
    %459 = vrot.lane.b32.xlu0 %v449, 127
    %v460 = vpop.permute.xlu0 %459
    %461 = vrot.lane.b32.xlu0 %v450, 127
    %v462 = vpop.permute.xlu0 %461
    %v467 = vadd.f32 %v441, %v456
    %v468 = vadd.f32 %v442, %v458
    %v469 = vadd.f32 %v443, %v460
    %v470 = vadd.f32 %v444, %v462
    %s471 = sld [smem:[#allocation2 + $0x17]]
    %v472 = vstv %s471
    %v473 = vmul.f32 %v472, %v432
    %v474 = vmul.f32 %v472, %v433
    %v475 = vmul.f32 %v472, %v434
    %v476 = vmul.f32 %v472, %v435
    %481 = vrot.lane.b32.xlu0 %v473, 126
    %v482 = vpop.permute.xlu0 %481
    %483 = vrot.lane.b32.xlu0 %v474, 126
    %v484 = vpop.permute.xlu0 %483
    %485 = vrot.lane.b32.xlu0 %v475, 126
    %v486 = vpop.permute.xlu0 %485
    %487 = vrot.lane.b32.xlu0 %v476, 126
    %v488 = vpop.permute.xlu0 %487
    %v493 = vadd.f32 %v467, %v482
    %v494 = vadd.f32 %v468, %v484
    %v495 = vadd.f32 %v469, %v486
    %v496 = vadd.f32 %v470, %v488
    %s497 = sld [smem:[#allocation2 + $0x1e]]
    %v498 = vld [vmem:[%s237 + $0x1] sm:$0xff]
    %v499 = vld [vmem:[%s237 + $0x9] sm:$0x3f]
    %v500 = vld [vmem:[%s237 + $0x41] sm:$0xff]
    %v501 = vld [vmem:[%s237 + $0x49] sm:$0x3f]
    %v502 = vstv %s497
    %v503 = vmul.f32 %v502, %v498
    %v504 = vmul.f32 %v502, %v499
    %v505 = vmul.f32 %v502, %v500
    %v506 = vmul.f32 %v502, %v501
    %v507 = vadd.f32 %v493, %v503
    %v508 = vadd.f32 %v494, %v504
    %v509 = vadd.f32 %v495, %v505
    %v510 = vadd.f32 %v496, %v506
    %s511 = sld [smem:[#allocation2 + $0x1f]]
    %v512 = vstv %s511
    %v513 = vmul.f32 %v512, %v498
    %v514 = vmul.f32 %v512, %v499
    %v515 = vmul.f32 %v512, %v500
    %v516 = vmul.f32 %v512, %v501
    %521 = vrot.lane.b32.xlu0 %v513, 127
    %v522 = vpop.permute.xlu0 %521
    %523 = vrot.lane.b32.xlu0 %v514, 127
    %v524 = vpop.permute.xlu0 %523
    %525 = vrot.lane.b32.xlu0 %v515, 127
    %v526 = vpop.permute.xlu0 %525
    %527 = vrot.lane.b32.xlu0 %v516, 127
    %v528 = vpop.permute.xlu0 %527
    %v533 = vadd.f32 %v507, %v522
    %v534 = vadd.f32 %v508, %v524
    %v535 = vadd.f32 %v509, %v526
    %v536 = vadd.f32 %v510, %v528
    %s537 = sld [smem:[#allocation2 + $0x20]]
    %v538 = vstv %s537
    %v539 = vmul.f32 %v538, %v498
    %v540 = vmul.f32 %v538, %v499
    %v541 = vmul.f32 %v538, %v500
    %v542 = vmul.f32 %v538, %v501
    %547 = vrot.lane.b32.xlu0 %v539, 126
    %v548 = vpop.permute.xlu0 %547
    %549 = vrot.lane.b32.xlu0 %v540, 126
    %v550 = vpop.permute.xlu0 %549
    %551 = vrot.lane.b32.xlu0 %v541, 126
    %v552 = vpop.permute.xlu0 %551
    %553 = vrot.lane.b32.xlu0 %v542, 126
    %v554 = vpop.permute.xlu0 %553
    %v559 = vadd.f32 %v533, %v548
    %v560 = vadd.f32 %v534, %v550
    %v561 = vadd.f32 %v535, %v552
    %v562 = vadd.f32 %v536, %v554
    %s563 = sld [smem:[#allocation2 + $0x6]]
    %v564 = vld [vmem:[#allocation5 + $0x2] sm:$0xff]
    %v565 = vld [vmem:[#allocation5 + $0xa] sm:$0x3f]
    %v566 = vld [vmem:[#allocation5 + $0x42] sm:$0xff]
    %v567 = vld [vmem:[#allocation5 + $0x4a] sm:$0x3f]
    %v568 = vstv %s563
    %v569 = vmul.f32 %v568, %v564
    %v570 = vmul.f32 %v568, %v565
    %v571 = vmul.f32 %v568, %v566
    %v572 = vmul.f32 %v568, %v567
    %s573 = sld [smem:[#allocation2 + $0x7]]
    %v574 = vstv %s573
    %v575 = vmul.f32 %v574, %v564
    %v576 = vmul.f32 %v574, %v565
    %v577 = vmul.f32 %v574, %v566
    %v578 = vmul.f32 %v574, %v567
    %583 = vrot.lane.b32.xlu0 %v575, 127
    %v584 = vpop.permute.xlu0 %583
    %585 = vrot.lane.b32.xlu0 %v576, 127
    %v586 = vpop.permute.xlu0 %585
    %587 = vrot.lane.b32.xlu0 %v577, 127
    %v588 = vpop.permute.xlu0 %587
    %589 = vrot.lane.b32.xlu0 %v578, 127
    %v590 = vpop.permute.xlu0 %589
    %v595 = vadd.f32 %v569, %v584
    %v596 = vadd.f32 %v570, %v586
    %v597 = vadd.f32 %v571, %v588
    %v598 = vadd.f32 %v572, %v590
    %s599 = sld [smem:[#allocation2 + $0x8]]
    %v600 = vstv %s599
    %v601 = vmul.f32 %v600, %v564
    %v602 = vmul.f32 %v600, %v565
    %v603 = vmul.f32 %v600, %v566
    %v604 = vmul.f32 %v600, %v567
    %609 = vrot.lane.b32.xlu0 %v601, 126
    %v610 = vpop.permute.xlu0 %609
    %611 = vrot.lane.b32.xlu0 %v602, 126
    %v612 = vpop.permute.xlu0 %611
    %613 = vrot.lane.b32.xlu0 %v603, 126
    %v614 = vpop.permute.xlu0 %613
    %615 = vrot.lane.b32.xlu0 %v604, 126
    %v616 = vpop.permute.xlu0 %615
    %v621 = vadd.f32 %v595, %v610
    %v622 = vadd.f32 %v596, %v612
    %v623 = vadd.f32 %v597, %v614
    %v624 = vadd.f32 %v598, %v616
    %s625 = sld [smem:[#allocation2 + $0xf]]
    %v626 = vld [vmem:[%s103 + $0x2] sm:$0xff]
    %v627 = vld [vmem:[%s103 + $0xa] sm:$0x3f]
    %v628 = vld [vmem:[%s103 + $0x42] sm:$0xff]
    %v629 = vld [vmem:[%s103 + $0x4a] sm:$0x3f]
    %v630 = vstv %s625
    %v631 = vmul.f32 %v630, %v626
    %v632 = vmul.f32 %v630, %v627
    %v633 = vmul.f32 %v630, %v628
    %v634 = vmul.f32 %v630, %v629
    %v635 = vadd.f32 %v621, %v631
    %v636 = vadd.f32 %v622, %v632
    %v637 = vadd.f32 %v623, %v633
    %v638 = vadd.f32 %v624, %v634
    %s639 = sld [smem:[#allocation2 + $0x10]]
    %v640 = vstv %s639
    %v641 = vmul.f32 %v640, %v626
    %v642 = vmul.f32 %v640, %v627
    %v643 = vmul.f32 %v640, %v628
    %v644 = vmul.f32 %v640, %v629
    %649 = vrot.lane.b32.xlu0 %v641, 127
    %v650 = vpop.permute.xlu0 %649
    %651 = vrot.lane.b32.xlu0 %v642, 127
    %v652 = vpop.permute.xlu0 %651
    %653 = vrot.lane.b32.xlu0 %v643, 127
    %v654 = vpop.permute.xlu0 %653
    %655 = vrot.lane.b32.xlu0 %v644, 127
    %v656 = vpop.permute.xlu0 %655
    %v661 = vadd.f32 %v635, %v650
    %v662 = vadd.f32 %v636, %v652
    %v663 = vadd.f32 %v637, %v654
    %v664 = vadd.f32 %v638, %v656
    %s665 = sld [smem:[#allocation2 + $0x11]]
    %v666 = vstv %s665
    %v667 = vmul.f32 %v666, %v626
    %v668 = vmul.f32 %v666, %v627
    %v669 = vmul.f32 %v666, %v628
    %v670 = vmul.f32 %v666, %v629
    %675 = vrot.lane.b32.xlu0 %v667, 126
    %v676 = vpop.permute.xlu0 %675
    %677 = vrot.lane.b32.xlu0 %v668, 126
    %v678 = vpop.permute.xlu0 %677
    %679 = vrot.lane.b32.xlu0 %v669, 126
    %v680 = vpop.permute.xlu0 %679
    %681 = vrot.lane.b32.xlu0 %v670, 126
    %v682 = vpop.permute.xlu0 %681
    %v687 = vadd.f32 %v661, %v676
    %v688 = vadd.f32 %v662, %v678
    %v689 = vadd.f32 %v663, %v680
    %v690 = vadd.f32 %v664, %v682
    %s691 = sld [smem:[#allocation2 + $0x18]]
    %v692 = vld [vmem:[%s170 + $0x2] sm:$0xff]
    %v693 = vld [vmem:[%s170 + $0xa] sm:$0x3f]
    %v694 = vld [vmem:[%s170 + $0x42] sm:$0xff]
    %v695 = vld [vmem:[%s170 + $0x4a] sm:$0x3f]
    %v696 = vstv %s691
    %v697 = vmul.f32 %v696, %v692
    %v698 = vmul.f32 %v696, %v693
    %v699 = vmul.f32 %v696, %v694
    %v700 = vmul.f32 %v696, %v695
    %v701 = vadd.f32 %v687, %v697
    %v702 = vadd.f32 %v688, %v698
    %v703 = vadd.f32 %v689, %v699
    %v704 = vadd.f32 %v690, %v700
    %s705 = sld [smem:[#allocation2 + $0x19]]
    %v706 = vstv %s705
    %v707 = vmul.f32 %v706, %v692
    %v708 = vmul.f32 %v706, %v693
    %v709 = vmul.f32 %v706, %v694
    %v710 = vmul.f32 %v706, %v695
    %715 = vrot.lane.b32.xlu0 %v707, 127
    %v716 = vpop.permute.xlu0 %715
    %717 = vrot.lane.b32.xlu0 %v708, 127
    %v718 = vpop.permute.xlu0 %717
    %719 = vrot.lane.b32.xlu0 %v709, 127
    %v720 = vpop.permute.xlu0 %719
    %721 = vrot.lane.b32.xlu0 %v710, 127
    %v722 = vpop.permute.xlu0 %721
    %v727 = vadd.f32 %v701, %v716
    %v728 = vadd.f32 %v702, %v718
    %v729 = vadd.f32 %v703, %v720
    %v730 = vadd.f32 %v704, %v722
    %s731 = sld [smem:[#allocation2 + $0x1a]]
    %v732 = vstv %s731
    %v733 = vmul.f32 %v732, %v692
    %v734 = vmul.f32 %v732, %v693
    %v735 = vmul.f32 %v732, %v694
    %v736 = vmul.f32 %v732, %v695
    %741 = vrot.lane.b32.xlu0 %v733, 126
    %v742 = vpop.permute.xlu0 %741
    %743 = vrot.lane.b32.xlu0 %v734, 126
    %v744 = vpop.permute.xlu0 %743
    %745 = vrot.lane.b32.xlu0 %v735, 126
    %v746 = vpop.permute.xlu0 %745
    %747 = vrot.lane.b32.xlu0 %v736, 126
    %v748 = vpop.permute.xlu0 %747
    %v753 = vadd.f32 %v727, %v742
    %v754 = vadd.f32 %v728, %v744
    %v755 = vadd.f32 %v729, %v746
    %v756 = vadd.f32 %v730, %v748
    %s757 = sld [smem:[#allocation2 + $0x21]]
    %v758 = vld [vmem:[%s237 + $0x2] sm:$0xff]
    %v759 = vld [vmem:[%s237 + $0xa] sm:$0x3f]
    %v760 = vld [vmem:[%s237 + $0x42] sm:$0xff]
    %v761 = vld [vmem:[%s237 + $0x4a] sm:$0x3f]
    %v762 = vstv %s757
    %v763 = vmul.f32 %v762, %v758
    %v764 = vmul.f32 %v762, %v759
    %v765 = vmul.f32 %v762, %v760
    %v766 = vmul.f32 %v762, %v761
    %v767 = vadd.f32 %v753, %v763
    %v768 = vadd.f32 %v754, %v764
    %v769 = vadd.f32 %v755, %v765
    %v770 = vadd.f32 %v756, %v766
    %s771 = sld [smem:[#allocation2 + $0x22]]
    %v772 = vstv %s771
    %v773 = vmul.f32 %v772, %v758
    %v774 = vmul.f32 %v772, %v759
    %v775 = vmul.f32 %v772, %v760
    %v776 = vmul.f32 %v772, %v761
    %781 = vrot.lane.b32.xlu0 %v773, 127
    %v782 = vpop.permute.xlu0 %781
    %783 = vrot.lane.b32.xlu0 %v774, 127
    %v784 = vpop.permute.xlu0 %783
    %785 = vrot.lane.b32.xlu0 %v775, 127
    %v786 = vpop.permute.xlu0 %785
    %787 = vrot.lane.b32.xlu0 %v776, 127
    %v788 = vpop.permute.xlu0 %787
    %v793 = vadd.f32 %v767, %v782
    %v794 = vadd.f32 %v768, %v784
    %v795 = vadd.f32 %v769, %v786
    %v796 = vadd.f32 %v770, %v788
    %s797 = sld [smem:[#allocation2 + $0x23]]
    %v798 = vstv %s797
    %v799 = vmul.f32 %v798, %v758
    %v800 = vmul.f32 %v798, %v759
    %v801 = vmul.f32 %v798, %v760
    %v802 = vmul.f32 %v798, %v761
    %807 = vrot.lane.b32.xlu0 %v799, 126
    %v808 = vpop.permute.xlu0 %807
    %809 = vrot.lane.b32.xlu0 %v800, 126
    %v810 = vpop.permute.xlu0 %809
    %811 = vrot.lane.b32.xlu0 %v801, 126
    %v812 = vpop.permute.xlu0 %811
    %813 = vrot.lane.b32.xlu0 %v802, 126
    %v814 = vpop.permute.xlu0 %813
    %v819 = vadd.f32 %v793, %v808
    %v820 = vadd.f32 %v794, %v810
    %v821 = vadd.f32 %v795, %v812
    %v822 = vadd.f32 %v796, %v814
    %v823 = vadd.f32 %v299, %v559
    %v824 = vadd.f32 %v300, %v560
    %v825 = vadd.f32 %v301, %v561
    %v826 = vadd.f32 %v302, %v562
    %v827 = vadd.f32 %v823, %v819
    %v828 = vadd.f32 %v824, %v820
    %v829 = vadd.f32 %v825, %v821
    %v830 = vadd.f32 %v826, %v822
    %s831 = sld [smem:[#allocation2 + $0x24]]
    %v832 = vstv %s831
    %v833 = vadd.f32 %v827, %v832
    %v834 = vadd.f32 %v828, %v832
    %v835 = vadd.f32 %v829, %v832
    %v836 = vadd.f32 %v830, %v832
    %vm837 = vcmask 113664
    %838 = vst.msk [vmem:[%s2] sm:$0xff] %vm837, %v833
    %vm839 = vcmask 111616
    %840 = vst.msk [vmem:[%s2 + $0x8] sm:$0x3f] %vm839, %v834
    %841 = vst.msk [vmem:[%s2 + $0x10] sm:$0xff] %vm837, %v835
    %842 = vst.msk [vmem:[%s2 + $0x18] sm:$0x3f] %vm839, %v836
    %v843 = vld [vmem:[%s2] sm:$0xff]
    %v844 = vld [vmem:[%s2 + $0x8] sm:$0xf]
    %v845 = vld [vmem:[%s2 + $0x10] sm:$0xff]
    %v846 = vld [vmem:[%s2 + $0x18] sm:$0xf]
    %s847 = sld [smem:[#allocation2 + $0x25]]
    %v848 = vstv %s847
    %v849 = vmul.f32 %v848, %v843
    %v850 = vmul.f32 %v848, %v844
    %v851 = vmul.f32 %v848, %v845
    %v852 = vmul.f32 %v848, %v846
    %s853 = sld [smem:[#allocation2 + $0x2f]]
    %v854 = vstv %s853
    %v855 = vmul.f32 %v854, %v843
    %v856 = vmul.f32 %v854, %v844
    %v857 = vmul.f32 %v854, %v845
    %v858 = vmul.f32 %v854, %v846
    %s859 = sld [smem:[#allocation2 + $0x26]]
    %v860 = vstv %s859
    %v861 = vmul.f32 %v860, %v843
    %v862 = vmul.f32 %v860, %v844
    %v863 = vmul.f32 %v860, %v845
    %v864 = vmul.f32 %v860, %v846
    %s865 = sld [smem:[#allocation2 + $0x30]]
    %v866 = vstv %s865
    %v867 = vmul.f32 %v866, %v843
    %v868 = vmul.f32 %v866, %v844
    %v869 = vmul.f32 %v866, %v845
    %v870 = vmul.f32 %v866, %v846
    %875 = vrot.lane.b32.xlu0 %v861, 127
    %v876 = vpop.permute.xlu0 %875
    %877 = vrot.lane.b32.xlu0 %v862, 127
    %v878 = vpop.permute.xlu0 %877
    %879 = vrot.lane.b32.xlu0 %v863, 127
    %v880 = vpop.permute.xlu0 %879
    %881 = vrot.lane.b32.xlu0 %v864, 127
    %v882 = vpop.permute.xlu0 %881
    %v887 = vadd.f32 %v849, %v876
    %v888 = vadd.f32 %v850, %v878
    %v889 = vadd.f32 %v851, %v880
    %v890 = vadd.f32 %v852, %v882
    %895 = vrot.lane.b32.xlu0 %v867, 127
    %v896 = vpop.permute.xlu0 %895
    %897 = vrot.lane.b32.xlu0 %v868, 127
    %v898 = vpop.permute.xlu0 %897
    %899 = vrot.lane.b32.xlu0 %v869, 127
    %v900 = vpop.permute.xlu0 %899
    %901 = vrot.lane.b32.xlu0 %v870, 127
    %v902 = vpop.permute.xlu0 %901
    %v907 = vadd.f32 %v855, %v896
    %v908 = vadd.f32 %v856, %v898
    %v909 = vadd.f32 %v857, %v900
    %v910 = vadd.f32 %v858, %v902
    %s911 = sld [smem:[#allocation2 + $0x27]]
    %v912 = vstv %s911
    %v913 = vmul.f32 %v912, %v843
    %v914 = vmul.f32 %v912, %v844
    %v915 = vmul.f32 %v912, %v845
    %v916 = vmul.f32 %v912, %v846
    %s917 = sld [smem:[#allocation2 + $0x31]]
    %v918 = vstv %s917
    %v919 = vmul.f32 %v918, %v843
    %v920 = vmul.f32 %v918, %v844
    %v921 = vmul.f32 %v918, %v845
    %v922 = vmul.f32 %v918, %v846
    %927 = vrot.lane.b32.xlu0 %v913, 126
    %v928 = vpop.permute.xlu0 %927
    %929 = vrot.lane.b32.xlu0 %v914, 126
    %v930 = vpop.permute.xlu0 %929
    %931 = vrot.lane.b32.xlu0 %v915, 126
    %v932 = vpop.permute.xlu0 %931
    %933 = vrot.lane.b32.xlu0 %v916, 126
    %v934 = vpop.permute.xlu0 %933
    %v939 = vadd.f32 %v887, %v928
    %v940 = vadd.f32 %v888, %v930
    %v941 = vadd.f32 %v889, %v932
    %v942 = vadd.f32 %v890, %v934
    %947 = vrot.lane.b32.xlu0 %v919, 126
    %v948 = vpop.permute.xlu0 %947
    %949 = vrot.lane.b32.xlu0 %v920, 126
    %v950 = vpop.permute.xlu0 %949
    %951 = vrot.lane.b32.xlu0 %v921, 126
    %v952 = vpop.permute.xlu0 %951
    %953 = vrot.lane.b32.xlu0 %v922, 126
    %v954 = vpop.permute.xlu0 %953
    %v959 = vadd.f32 %v907, %v948
    %v960 = vadd.f32 %v908, %v950
    %v961 = vadd.f32 %v909, %v952
    %v962 = vadd.f32 %v910, %v954
    %v963 = vld [vmem:[%s2 + $0x1] sm:$0xff]
    %v964 = vld [vmem:[%s2 + $0x9] sm:$0xf]
    %v965 = vld [vmem:[%s2 + $0x11] sm:$0xff]
    %v966 = vld [vmem:[%s2 + $0x19] sm:$0xf]
    %s967 = sld [smem:[#allocation2 + $0x28]]
    %v968 = vstv %s967
    %v969 = vmul.f32 %v968, %v963
    %v970 = vmul.f32 %v968, %v964
    %v971 = vmul.f32 %v968, %v965
    %v972 = vmul.f32 %v968, %v966
    %s973 = sld [smem:[#allocation2 + $0x32]]
    %v974 = vstv %s973
    %v975 = vmul.f32 %v974, %v963
    %v976 = vmul.f32 %v974, %v964
    %v977 = vmul.f32 %v974, %v965
    %v978 = vmul.f32 %v974, %v966
    %s979 = sld [smem:[#allocation2 + $0x29]]
    %v980 = vstv %s979
    %v981 = vmul.f32 %v980, %v963
    %v982 = vmul.f32 %v980, %v964
    %v983 = vmul.f32 %v980, %v965
    %v984 = vmul.f32 %v980, %v966
    %s985 = sld [smem:[#allocation2 + $0x33]]
    %v986 = vstv %s985
    %v987 = vmul.f32 %v986, %v963
    %v988 = vmul.f32 %v986, %v964
    %v989 = vmul.f32 %v986, %v965
    %v990 = vmul.f32 %v986, %v966
    %995 = vrot.lane.b32.xlu0 %v981, 127
    %v996 = vpop.permute.xlu0 %995
    %997 = vrot.lane.b32.xlu0 %v982, 127
    %v998 = vpop.permute.xlu0 %997
    %999 = vrot.lane.b32.xlu0 %v983, 127
    %v1000 = vpop.permute.xlu0 %999
    %1001 = vrot.lane.b32.xlu0 %v984, 127
    %v1002 = vpop.permute.xlu0 %1001
    %v1007 = vadd.f32 %v969, %v996
    %v1008 = vadd.f32 %v970, %v998
    %v1009 = vadd.f32 %v971, %v1000
    %v1010 = vadd.f32 %v972, %v1002
    %1015 = vrot.lane.b32.xlu0 %v987, 127
    %v1016 = vpop.permute.xlu0 %1015
    %1017 = vrot.lane.b32.xlu0 %v988, 127
    %v1018 = vpop.permute.xlu0 %1017
    %1019 = vrot.lane.b32.xlu0 %v989, 127
    %v1020 = vpop.permute.xlu0 %1019
    %1021 = vrot.lane.b32.xlu0 %v990, 127
    %v1022 = vpop.permute.xlu0 %1021
    %v1027 = vadd.f32 %v975, %v1016
    %v1028 = vadd.f32 %v976, %v1018
    %v1029 = vadd.f32 %v977, %v1020
    %v1030 = vadd.f32 %v978, %v1022
    %s1031 = sld [smem:[#allocation2 + $0x2a]]
    %v1032 = vstv %s1031
    %v1033 = vmul.f32 %v1032, %v963
    %v1034 = vmul.f32 %v1032, %v964
    %v1035 = vmul.f32 %v1032, %v965
    %v1036 = vmul.f32 %v1032, %v966
    %s1037 = sld [smem:[#allocation2 + $0x34]]
    %v1038 = vstv %s1037
    %v1039 = vmul.f32 %v1038, %v963
    %v1040 = vmul.f32 %v1038, %v964
    %v1041 = vmul.f32 %v1038, %v965
    %v1042 = vmul.f32 %v1038, %v966
    %1047 = vrot.lane.b32.xlu0 %v1033, 126
    %v1048 = vpop.permute.xlu0 %1047
    %1049 = vrot.lane.b32.xlu0 %v1034, 126
    %v1050 = vpop.permute.xlu0 %1049
    %1051 = vrot.lane.b32.xlu0 %v1035, 126
    %v1052 = vpop.permute.xlu0 %1051
    %1053 = vrot.lane.b32.xlu0 %v1036, 126
    %v1054 = vpop.permute.xlu0 %1053
    %v1059 = vadd.f32 %v1007, %v1048
    %v1060 = vadd.f32 %v1008, %v1050
    %v1061 = vadd.f32 %v1009, %v1052
    %v1062 = vadd.f32 %v1010, %v1054
    %1067 = vrot.lane.b32.xlu0 %v1039, 126
    %v1068 = vpop.permute.xlu0 %1067
    %1069 = vrot.lane.b32.xlu0 %v1040, 126
    %v1070 = vpop.permute.xlu0 %1069
    %1071 = vrot.lane.b32.xlu0 %v1041, 126
    %v1072 = vpop.permute.xlu0 %1071
    %1073 = vrot.lane.b32.xlu0 %v1042, 126
    %v1074 = vpop.permute.xlu0 %1073
    %v1079 = vadd.f32 %v1027, %v1068
    %v1080 = vadd.f32 %v1028, %v1070
    %v1081 = vadd.f32 %v1029, %v1072
    %v1082 = vadd.f32 %v1030, %v1074
    %v1083 = vld [vmem:[%s2 + $0x2] sm:$0xff]
    %v1084 = vld [vmem:[%s2 + $0xa] sm:$0xf]
    %v1085 = vld [vmem:[%s2 + $0x12] sm:$0xff]
    %v1086 = vld [vmem:[%s2 + $0x1a] sm:$0xf]
    %s1087 = sld [smem:[#allocation2 + $0x2b]]
    %v1088 = vstv %s1087
    %v1089 = vmul.f32 %v1088, %v1083
    %v1090 = vmul.f32 %v1088, %v1084
    %v1091 = vmul.f32 %v1088, %v1085
    %v1092 = vmul.f32 %v1088, %v1086
    %s1093 = sld [smem:[#allocation2 + $0x35]]
    %v1094 = vstv %s1093
    %v1095 = vmul.f32 %v1094, %v1083
    %v1096 = vmul.f32 %v1094, %v1084
    %v1097 = vmul.f32 %v1094, %v1085
    %v1098 = vmul.f32 %v1094, %v1086
    %s1099 = sld [smem:[#allocation2 + $0x2c]]
    %v1100 = vstv %s1099
    %v1101 = vmul.f32 %v1100, %v1083
    %v1102 = vmul.f32 %v1100, %v1084
    %v1103 = vmul.f32 %v1100, %v1085
    %v1104 = vmul.f32 %v1100, %v1086
    %s1105 = sld [smem:[#allocation2 + $0x36]]
    %v1106 = vstv %s1105
    %v1107 = vmul.f32 %v1106, %v1083
    %v1108 = vmul.f32 %v1106, %v1084
    %v1109 = vmul.f32 %v1106, %v1085
    %v1110 = vmul.f32 %v1106, %v1086
    %1115 = vrot.lane.b32.xlu0 %v1101, 127
    %v1116 = vpop.permute.xlu0 %1115
    %1117 = vrot.lane.b32.xlu0 %v1102, 127
    %v1118 = vpop.permute.xlu0 %1117
    %1119 = vrot.lane.b32.xlu0 %v1103, 127
    %v1120 = vpop.permute.xlu0 %1119
    %1121 = vrot.lane.b32.xlu0 %v1104, 127
    %v1122 = vpop.permute.xlu0 %1121
    %v1127 = vadd.f32 %v1089, %v1116
    %v1128 = vadd.f32 %v1090, %v1118
    %v1129 = vadd.f32 %v1091, %v1120
    %v1130 = vadd.f32 %v1092, %v1122
    %1135 = vrot.lane.b32.xlu0 %v1107, 127
    %v1136 = vpop.permute.xlu0 %1135
    %1137 = vrot.lane.b32.xlu0 %v1108, 127
    %v1138 = vpop.permute.xlu0 %1137
    %1139 = vrot.lane.b32.xlu0 %v1109, 127
    %v1140 = vpop.permute.xlu0 %1139
    %1141 = vrot.lane.b32.xlu0 %v1110, 127
    %v1142 = vpop.permute.xlu0 %1141
    %v1147 = vadd.f32 %v1095, %v1136
    %v1148 = vadd.f32 %v1096, %v1138
    %v1149 = vadd.f32 %v1097, %v1140
    %v1150 = vadd.f32 %v1098, %v1142
    %s1151 = sld [smem:[#allocation2 + $0x2d]]
    %v1152 = vstv %s1151
    %v1153 = vmul.f32 %v1152, %v1083
    %v1154 = vmul.f32 %v1152, %v1084
    %v1155 = vmul.f32 %v1152, %v1085
    %v1156 = vmul.f32 %v1152, %v1086
    %s1157 = sld [smem:[#allocation2 + $0x37]]
    %v1158 = vstv %s1157
    %v1159 = vmul.f32 %v1158, %v1083
    %v1160 = vmul.f32 %v1158, %v1084
    %v1161 = vmul.f32 %v1158, %v1085
    %v1162 = vmul.f32 %v1158, %v1086
    %1167 = vrot.lane.b32.xlu0 %v1153, 126
    %v1168 = vpop.permute.xlu0 %1167
    %1169 = vrot.lane.b32.xlu0 %v1154, 126
    %v1170 = vpop.permute.xlu0 %1169
    %1171 = vrot.lane.b32.xlu0 %v1155, 126
    %v1172 = vpop.permute.xlu0 %1171
    %1173 = vrot.lane.b32.xlu0 %v1156, 126
    %v1174 = vpop.permute.xlu0 %1173
    %v1179 = vadd.f32 %v1127, %v1168
    %v1180 = vadd.f32 %v1128, %v1170
    %v1181 = vadd.f32 %v1129, %v1172
    %v1182 = vadd.f32 %v1130, %v1174
    %1187 = vrot.lane.b32.xlu0 %v1159, 126
    %v1188 = vpop.permute.xlu0 %1187
    %1189 = vrot.lane.b32.xlu0 %v1160, 126
    %v1190 = vpop.permute.xlu0 %1189
    %1191 = vrot.lane.b32.xlu0 %v1161, 126
    %v1192 = vpop.permute.xlu0 %1191
    %1193 = vrot.lane.b32.xlu0 %v1162, 126
    %v1194 = vpop.permute.xlu0 %1193
    %v1199 = vadd.f32 %v1147, %v1188
    %v1200 = vadd.f32 %v1148, %v1190
    %v1201 = vadd.f32 %v1149, %v1192
    %v1202 = vadd.f32 %v1150, %v1194
    %v1203 = vadd.f32 %v939, %v1059
    %v1204 = vadd.f32 %v940, %v1060
    %v1205 = vadd.f32 %v941, %v1061
    %v1206 = vadd.f32 %v942, %v1062
    %v1207 = vadd.f32 %v959, %v1079
    %v1208 = vadd.f32 %v960, %v1080
    %v1209 = vadd.f32 %v961, %v1081
    %v1210 = vadd.f32 %v962, %v1082
    %v1211 = vadd.f32 %v1203, %v1179
    %v1212 = vadd.f32 %v1204, %v1180
    %v1213 = vadd.f32 %v1205, %v1181
    %v1214 = vadd.f32 %v1206, %v1182
    %v1215 = vadd.f32 %v1207, %v1199
    %v1216 = vadd.f32 %v1208, %v1200
    %v1217 = vadd.f32 %v1209, %v1201
    %v1218 = vadd.f32 %v1210, %v1202
    %s1219 = sld [smem:[#allocation2 + $0x2e]]
    %v1220 = vstv %s1219
    %v1221 = vadd.f32 %v1211, %v1220
    %v1222 = vadd.f32 %v1212, %v1220
    %v1223 = vadd.f32 %v1213, %v1220
    %v1224 = vadd.f32 %v1214, %v1220
    %vm1225 = vcmask 97280
    %1226 = vst.msk [vmem:[%s3] sm:$0xff] %vm1225, %v1221
    %vm1227 = vcmask 93184
    %1228 = vst.msk [vmem:[%s3 + $0x8] sm:$0xf] %vm1227, %v1222
    %1229 = vst.msk [vmem:[%s3 + $0x20] sm:$0xff] %vm1225, %v1223
    %1230 = vst.msk [vmem:[%s3 + $0x28] sm:$0xf] %vm1227, %v1224
    %s1231 = sld [smem:[#allocation2 + $0x38]]
    %v1232 = vstv %s1231
    %v1233 = vadd.f32 %v1215, %v1232
    %v1234 = vadd.f32 %v1216, %v1232
    %v1235 = vadd.f32 %v1217, %v1232
    %v1236 = vadd.f32 %v1218, %v1232
    %s1237 = scalar_lea.vmem %s3, 16
    %1238 = vst.msk [vmem:[%s1237] sm:$0xff] %vm1225, %v1233
    %1239 = vst.msk [vmem:[%s1237 + $0x8] sm:$0xf] %vm1227, %v1234
    %1240 = vst.msk [vmem:[%s1237 + $0x20] sm:$0xff] %vm1225, %v1235
    %1241 = vst.msk [vmem:[%s1237 + $0x28] sm:$0xf] %vm1227, %v1236
    // Predicated region
    $region18: #{_pallas_forward.1} parent=1 // pred_check
      _
    $region19: #{_pallas_forward.1} parent=1 // pred_check_branch
      %1243 = sbr.rel (0) target = $region21
    $region20: #{_pallas_forward.1} parent=1 // pred_region
      _
    $region21: #{_pallas_forward.1} parent=1 // pred_fallthru
      _
    // Predicated region
    $region22: #{_pallas_forward.1} parent=1 // pred_check
      _
    $region23: #{_pallas_forward.1} parent=1 // pred_check_branch
      %1245 = sbr.rel (0) target = $region25
    $region24: #{_pallas_forward.1} parent=1 // pred_region
      _
    $region25: #{_pallas_forward.1} parent=1 // pred_fallthru
      _
    // Predicated region
    $region26: #{_pallas_forward.1} parent=1 // pred_check
      _
    $region27: #{_pallas_forward.1} parent=1 // pred_check_branch
      %1247 = sbr.rel (0) target = $region29
    $region28: #{_pallas_forward.1} parent=1 // pred_region
      _
    $region29: #{_pallas_forward.1} parent=1 // pred_fallthru
      _
    // Predicated region
    $region30: #{_pallas_forward.1} parent=1 // pred_check
      _
    $region31: #{_pallas_forward.1} parent=1 // pred_check_branch
      %1249 = sbr.rel (0) target = $region33
    $region32: #{_pallas_forward.1} parent=1 // pred_region
      _
    $region33: #{_pallas_forward.1} parent=1 // pred_fallthru
      _
    %1250 = vsyncpa [#allocation3], 1
    %1251 = vsyncpa [#allocation4], 1

</llo_original>
